<compile_context>
chip_gen: v6e
topology: v6e:2x2x1
jax: 0.10.0
libtpu: 0.0.40
codegen_flags: <defaults>
</compile_context>

<pallas_src>
import functools

import numpy as np

import jax
import jax.numpy as jnp
from jax import lax
from jax.experimental import pallas as pl
from jax.experimental.pallas import tpu as pltpu

_INV_SQRT2 = 0.7071067811865475


def _gelu_exact(x):
    # torch.nn.GELU() default is the exact erf formulation.
    return 0.5 * x * (1.0 + lax.erf(x * _INV_SQRT2))


def cab_kernel(x_ref, m_ref, w1g_ref, b1_ref, w2a_ref, b2_ref,
               wca1_ref, bca1_ref, wca2t_ref, bca2t_ref,
               o_ref, k2_scr, *, H, W, Nb, Cmp):
    """One block of Nb images per grid step.

    x_ref   : (C, L)        bf16, L = Nb*H*W, images back-to-back along lanes
    m_ref   : (8, L)        f32 multiplicative halo masks (per-image masks tiled Nb times)
    w1g_ref : (3, 3*Cmp, C) bf16 conv1 taps, 3 taps stacked on the M axis per group
    b1_ref  : (Cmp, 1)      f32 (padded rows are zero)
    w2a_ref : (C, 9*Cmp)    bf16 conv2 taps stacked on the K axis (padded cols are zero)
    b2_ref  : (C, 1)        f32
    wca*/bca*               f32 channel-attention parameters
    k2_scr  : (9*Cmp, L)    f32 VMEM scratch: shifted/masked conv2 K-stack (im2col)
    """
    HW = H * W
    L = Nb * HW
    xb = x_ref[...]                                            # (C, L) bf16
    masks = m_ref[...]                                         # (8, L) f32

    offs = [(k // 3 - 1, k % 3 - 1) for k in range(9)]

    # ---- conv1: 3 fused tap-group matmuls (bf16 MXU, f32 acc); per-tap partials rolled
    #      (XLU) + masked (VPU) straight from values -- no VMEM round trip. ----
    acc1 = jnp.zeros((Cmp, L), jnp.float32)
    for g in range(3):
        pg = jnp.dot(w1g_ref[g], xb, preferred_element_type=jnp.float32)   # (3*Cmp, L)
        for j in range(3):
            k = 3 * g + j
            oh, ow = offs[k]
            delta = oh * W + ow
            blk = pg[j * Cmp:(j + 1) * Cmp, :]                 # sublane-aligned value slice
            if delta != 0:
                blk = pltpu.roll(blk, (-delta) % L, 1)         # lane rotate (XLU)
            if k != 4:                                         # center tap needs no mask
                mk = k if k < 4 else k - 1
                blk = blk * masks[mk:mk + 1, :]
            acc1 = acc1 + blk
    # GELU(0) == 0 and padded bias rows are 0  =>  padded rows of y1 stay exactly 0.
    y1 = _gelu_exact(acc1 + b1_ref[...])                       # (Cmp, L) f32

    # ---- conv2: build shifted/masked K-stack in one f32 scratch, single fused bf16 matmul ----
    for k in range(9):
        oh, ow = offs[k]
        delta = oh * W + ow
        blk = y1 if delta == 0 else pltpu.roll(y1, (-delta) % L, 1)
        if k != 4:
            mk = k if k < 4 else k - 1
            blk = blk * masks[mk:mk + 1, :]
        k2_scr[k * Cmp:(k + 1) * Cmp, :] = blk                 # sublane-aligned store

    acc2 = jnp.dot(w2a_ref[...], k2_scr[...].astype(jnp.bfloat16),
                   preferred_element_type=jnp.float32) + b2_ref[...]       # (C, L) f32

    # ---- channel attention per image: pool -> 1x1 -> ReLU -> 1x1 -> sigmoid (VPU/XLU only) ----
    for n in range(Nb):
        a = acc2[:, n * HW:(n + 1) * HW]                                   # (C, HW)
        pooled = jnp.mean(a, axis=1, keepdims=True)                        # (C, 1)
        z = jnp.sum(pooled * wca1_ref[...], axis=0, keepdims=True) + bca1_ref[...]   # (1, Csq)
        z = jnp.maximum(z, 0.0)
        s = jnp.sum(wca2t_ref[...] * z, axis=1, keepdims=True) + bca2t_ref[...]      # (C, 1)
        s = jax.nn.sigmoid(s)
        o_ref[:, n * HW:(n + 1) * HW] = (a * s).astype(o_ref.dtype)        # lane-dense store


def prepare_params(params):
    """One-time repacking of CAB parameters into MXU-friendly layouts (weight-stationary)."""
    w1, b1, w2, b2, wca1, bca1, wca2, bca2 = params
    C, Cm = w1.shape[2], w1.shape[3]
    Csq = wca1.shape[1]
    Cmp = ((Cm + 7) // 8) * 8              # sublane-align the compressed channel dim

    # conv1 weights (3,3,C,Cm) HWIO -> (3 groups, 3*Cmp, C): taps stacked on the M axis,
    # zero-padded rows, bf16 for the MXU.
    w1a = jnp.transpose(w1, (0, 1, 3, 2)).reshape(9, Cm, C)
    w1a = jnp.pad(w1a, ((0, 0), (0, Cmp - Cm), (0, 0)))
    w1g = w1a.reshape(3, 3 * Cmp, C).astype(jnp.bfloat16)
    b1p = jnp.pad(b1.reshape(Cm), (0, Cmp - Cm)).reshape(Cmp, 1).astype(jnp.float32)

    # conv2 weights (3,3,Cm,C) HWIO -> (C, 9*Cmp): taps stacked on the K axis, zero-padded cols.
    w2a = jnp.pad(w2.reshape(9, Cm, C), ((0, 0), (0, Cmp - Cm), (0, 0)))
    w2a = jnp.transpose(w2a, (2, 0, 1)).reshape(C, 9 * Cmp).astype(jnp.bfloat16)
    b2p = b2.reshape(C, 1).astype(jnp.float32)

    return dict(
        w1g=w1g, b1=b1p, w2a=w2a, b2=b2p,
        wca1=wca1.astype(jnp.float32),
        bca1=bca1.reshape(1, Csq).astype(jnp.float32),
        wca2t=jnp.transpose(wca2).astype(jnp.float32),   # (C, Csq)
        bca2t=bca2.reshape(C, 1).astype(jnp.float32),
        C=C, Cm=Cm, Cmp=Cmp, Csq=Csq,
    )


def _halo_masks(H, W, Nb):
    """(8, Nb*H*W) f32 multiplicative masks for the 8 non-center taps (host-precomputed)."""
    hh = np.arange(H).reshape(H, 1)
    ww = np.arange(W).reshape(1, W)
    rows = []
    for k in range(9):
        if k == 4:
            continue
        oh, ow = k // 3 - 1, k % 3 - 1
        valid = (hh + oh >= 0) & (hh + oh < H) & (ww + ow >= 0) & (ww + ow < W)
        rows.append(valid.reshape(-1).astype(np.float32))
    m = np.stack(rows, axis=0)                       # (8, H*W)
    return jnp.asarray(np.tile(m, (1, Nb)))          # (8, Nb*H*W)


def _pick_images_per_step(n, cap=8):
    """Largest divisor of n (<= cap) that still leaves a grid of >= 2 steps, so the
    "parallel" grid axis can feed both TensorCores on v7x.  Cap keeps per-step VMEM small."""
    best = 1
    for d in range(1, min(n, cap) + 1):
        if n % d == 0 and n // d >= 2:
            best = d
    return best


def cab_forward(x_nchw, packed, *, images_per_step=None):
    """CAB forward. x_nchw: (N, C, H, W) float32; `packed` from prepare_params. -> (N, C, H, W)."""
    N, C, H, W = x_nchw.shape
    assert C == packed["C"]
    HW = H * W
    Cmp, Csq = packed["Cmp"], packed["Csq"]
    Nb = images_per_step if images_per_step is not None else _pick_images_per_step(N)
    assert N % Nb == 0
    L = Nb * HW

    # Lane-dense batched layout: channels in sublanes, (image, pixel) flattened along lanes.
    # bf16 input halves per-step DMA and feeds the MXU natively (accumulation stays f32).
    x2 = x_nchw.reshape(N, C, HW).transpose(1, 0, 2).reshape(C, N * HW).astype(jnp.bfloat16)
    masks = _halo_masks(H, W, Nb)

    kernel = functools.partial(cab_kernel, H=H, W=W, Nb=Nb, Cmp=Cmp)
    out2d = pl.pallas_call(
        kernel,
        out_shape=jax.ShapeDtypeStruct((C, N * HW), jnp.float32),
        grid_spec=pltpu.PrefetchScalarGridSpec(
            num_scalar_prefetch=0,
            grid=(N // Nb,),
            in_specs=[
                pl.BlockSpec((C, L), lambda n: (0, n)),            # x (bf16)
                pl.BlockSpec((8, L), lambda n: (0, 0)),            # halo masks
                pl.BlockSpec((3, 3 * Cmp, C), lambda n: (0, 0, 0)),  # conv1 tap groups (bf16)
                pl.BlockSpec((Cmp, 1), lambda n: (0, 0)),          # b1
                pl.BlockSpec((C, 9 * Cmp), lambda n: (0, 0)),      # conv2 K-stacked taps (bf16)
                pl.BlockSpec((C, 1), lambda n: (0, 0)),            # b2
                pl.BlockSpec((C, Csq), lambda n: (0, 0)),          # wca1
                pl.BlockSpec((1, Csq), lambda n: (0, 0)),          # bca1
                pl.BlockSpec((C, Csq), lambda n: (0, 0)),          # wca2^T
                pl.BlockSpec((C, 1), lambda n: (0, 0)),            # bca2^T
            ],
            out_specs=pl.BlockSpec((C, L), lambda n: (0, n)),
            scratch_shapes=[pltpu.VMEM((9 * Cmp, L), jnp.float32)],  # conv2 K-stack (only scratch)
        ),
        compiler_params=pltpu.CompilerParams(
            dimension_semantics=("parallel",)),                     # shard batch across TCs
    )(x2, masks, packed["w1g"], packed["b1"], packed["w2a"], packed["b2"],
      packed["wca1"], packed["bca1"], packed["wca2t"], packed["bca2t"])

    return out2d.reshape(C, N, HW).transpose(1, 0, 2).reshape(N, C, H, W)


def cab_reference(x_nchw, params):
    """Pure-JAX f32 reference (mirrors the PyTorch forward)."""
    w1, b1, w2, b2, wca1, bca1, wca2, bca2 = params
    xh = jnp.transpose(x_nchw, (0, 2, 3, 1))
    dn1 = lax.conv_dimension_numbers(xh.shape, w1.shape, ('NHWC', 'HWIO', 'NHWC'))
    y1 = lax.conv_general_dilated(xh, w1, (1, 1), 'SAME', dimension_numbers=dn1,
                                  precision=lax.Precision.HIGHEST) + b1.reshape(1, 1, 1, -1)
    y1 = 0.5 * y1 * (1.0 + lax.erf(y1 / jnp.sqrt(2.0)))
    dn2 = lax.conv_dimension_numbers(y1.shape, w2.shape, ('NHWC', 'HWIO', 'NHWC'))
    y2 = lax.conv_general_dilated(y1, w2, (1, 1), 'SAME', dimension_numbers=dn2,
                                  precision=lax.Precision.HIGHEST) + b2.reshape(1, 1, 1, -1)
    pooled = jnp.mean(y2, axis=(1, 2))                       # (N, C)
    z = jnp.maximum(pooled @ wca1 + bca1, 0.0)
    s = jax.nn.sigmoid(z @ wca2 + bca2)
    out = y2 * s[:, None, None, :]
    return jnp.transpose(out, (0, 3, 1, 2))


if __name__ == "__main__":
    # Shapes consistent with CAB(num_feat=60, compress_ratio=3, squeeze_factor=30)
    N, C, H, W = 2, 60, 16, 16
    compress_ratio, squeeze_factor = 3, 30
    Cm = C // compress_ratio          # 20
    Csq = C // squeeze_factor         # 2

    key = jax.random.PRNGKey(0)
    ks = jax.random.split(key, 10)
    x = jax.random.normal(ks[0], (N, C, H, W), jnp.float32)

    # Deterministic synthetic parameters (not a checkpoint load).
    w1 = jax.random.normal(ks[1], (3, 3, C, Cm), jnp.float32) * 0.05
    b1 = jax.random.normal(ks[2], (1, Cm), jnp.float32) * 0.01
    w2 = jax.random.normal(ks[3], (3, 3, Cm, C), jnp.float32) * 0.05
    b2 = jax.random.normal(ks[4], (1, C), jnp.float32) * 0.01
    wca1 = jax.random.normal(ks[5], (C, Csq), jnp.float32) * 0.05
    bca1 = jax.random.normal(ks[6], (1, Csq), jnp.float32) * 0.01
    wca2 = jax.random.normal(ks[7], (Csq, C), jnp.float32) * 0.05
    bca2 = jax.random.normal(ks[8], (1, C), jnp.float32) * 0.01
    params = (w1, b1, w2, b2, wca1, bca1, wca2, bca2)

    packed = prepare_params(params)   # one-time weight repacking (weight-stationary)

    # Tolerances reflect bf16 MXU operands (f32 accumulation); f32 reference below.
    MAX_TOL, MEAN_TOL = 3e-2, 3e-3

    # Default path (N=2 -> 1 image/step, grid of 2).
    out = jax.block_until_ready(cab_forward(x, packed))
    ref = jax.block_until_ready(cab_reference(x, params))
    max_err = float(jnp.max(jnp.abs(out - ref)))
    mean_err = float(jnp.mean(jnp.abs(out - ref)))
    assert out.shape == (N, C, H, W), out.shape
    assert max_err < MAX_TOL and mean_err < MEAN_TOL, (max_err, mean_err)

    # Batched path (2 images/step) to exercise cross-image roll + mask handling.
    x4 = jax.random.normal(ks[9], (4, C, H, W), jnp.float32)
    out4 = jax.block_until_ready(cab_forward(x4, packed, images_per_step=2))
    ref4 = jax.block_until_ready(cab_reference(x4, params))
    max_err4 = float(jnp.max(jnp.abs(out4 - ref4)))
    mean_err4 = float(jnp.mean(jnp.abs(out4 - ref4)))
    assert out4.shape == (4, C, H, W), out4.shape
    assert max_err4 < MAX_TOL and mean_err4 < MEAN_TOL, (max_err4, mean_err4)

    print("KERNEL_OK")
</pallas_src>

<mosaic_0001>
module attributes {stable_mosaic.version = 11 : i64} {
  func.func @cab_kernel(%arg0: i32, %arg1: memref<60x256xbf16, #tpu.memory_space<vmem>>, %arg2: memref<8x256xf32, #tpu.memory_space<vmem>>, %arg3: memref<3x72x60xbf16, #tpu.memory_space<vmem>>, %arg4: memref<24x1xf32, #tpu.memory_space<vmem>>, %arg5: memref<60x216xbf16, #tpu.memory_space<vmem>>, %arg6: memref<60x1xf32, #tpu.memory_space<vmem>>, %arg7: memref<60x2xf32, #tpu.memory_space<vmem>>, %arg8: memref<1x2xf32, #tpu.memory_space<vmem>>, %arg9: memref<60x2xf32, #tpu.memory_space<vmem>>, %arg10: memref<60x1xf32, #tpu.memory_space<vmem>>, %arg11: memref<60x256xf32, #tpu.memory_space<vmem>>, %arg12: memref<216x256xf32, #tpu.memory_space<vmem>>) attributes {dimension_semantics = [#tpu.dimension_semantics<parallel>], iteration_bounds = array<i64: 2>, scalar_prefetch = 0 : i64, scratch_operands = 1 : i64, tpu.core_type = #tpu.core_type<tc>, window_params = [{transform_indices = @transform_0, window_bounds = array<i64: 60, 256>}, {pipeline_mode = #tpu.pipeline_mode<synchronous>, transform_indices = @transform_1, window_bounds = array<i64: 8, 256>}, {pipeline_mode = #tpu.pipeline_mode<synchronous>, transform_indices = @transform_2, window_bounds = array<i64: 3, 72, 60>}, {pipeline_mode = #tpu.pipeline_mode<synchronous>, transform_indices = @transform_3, window_bounds = array<i64: 24, 1>}, {pipeline_mode = #tpu.pipeline_mode<synchronous>, transform_indices = @transform_4, window_bounds = array<i64: 60, 216>}, {pipeline_mode = #tpu.pipeline_mode<synchronous>, transform_indices = @transform_5, window_bounds = array<i64: 60, 1>}, {pipeline_mode = #tpu.pipeline_mode<synchronous>, transform_indices = @transform_6, window_bounds = array<i64: 60, 2>}, {pipeline_mode = #tpu.pipeline_mode<synchronous>, transform_indices = @transform_7, window_bounds = array<i64: 1, 2>}, {pipeline_mode = #tpu.pipeline_mode<synchronous>, transform_indices = @transform_8, window_bounds = array<i64: 60, 2>}, {pipeline_mode = #tpu.pipeline_mode<synchronous>, transform_indices = @transform_9, window_bounds = array<i64: 60, 1>}, {transform_indices = @transform_10, window_bounds = array<i64: 60, 256>}]} {
    %c0 = arith.constant 0 : index
    %c0_0 = arith.constant 0 : index
    %0 = vector.load %arg1[%c0, %c0_0] : memref<60x256xbf16, #tpu.memory_space<vmem>>, vector<60x256xbf16>
    %c0_1 = arith.constant 0 : index
    %c0_2 = arith.constant 0 : index
    %1 = vector.load %arg2[%c0_1, %c0_2] : memref<8x256xf32, #tpu.memory_space<vmem>>, vector<8x256xf32>
    %cst = arith.constant 0.000000e+00 : f32
    %2 = vector.broadcast %cst : f32 to vector<24x256xf32>
    %c0_3 = arith.constant 0 : index
    %c0_4 = arith.constant 0 : index
    %c0_5 = arith.constant 0 : index
    %3 = vector.load %arg3[%c0_3, %c0_4, %c0_5] : memref<3x72x60xbf16, #tpu.memory_space<vmem>>, vector<1x72x60xbf16>
    %4 = vector.shape_cast %3 : vector<1x72x60xbf16> to vector<72x60xbf16>
    %cst_6 = arith.constant dense<0.000000e+00> : vector<72x256xf32>
    %5 = tpu.matmul %4, %0, %cst_6 {dimension_numbers = #tpu.dot_dimension_numbers<[1], [0], [0], [1], [0, 0, 1, 1], [], []>} : vector<72x60xbf16>, vector<60x256xbf16>, vector<72x256xf32> -> vector<72x256xf32>
    %6 = vector.extract_strided_slice %5 {offsets = [0, 0], sizes = [24, 256], strides = [1, 1]} : vector<72x256xf32> to vector<24x256xf32>
    %c17_i32 = arith.constant 17 : i32
    %7 = tpu.dynamic_rotate %6 by %c17_i32 dim 1 : vector<24x256xf32>, i32 -> vector<24x256xf32>
    %8 = vector.extract_strided_slice %1 {offsets = [0, 0], sizes = [1, 256], strides = [1, 1]} : vector<8x256xf32> to vector<1x256xf32>
    %9 = vector.broadcast %8 : vector<1x256xf32> to vector<24x256xf32>
    %10 = arith.mulf %7, %9 : vector<24x256xf32>
    %11 = arith.addf %2, %10 : vector<24x256xf32>
    %12 = vector.extract_strided_slice %5 {offsets = [24, 0], sizes = [24, 256], strides = [1, 1]} : vector<72x256xf32> to vector<24x256xf32>
    %c16_i32 = arith.constant 16 : i32
    %13 = tpu.dynamic_rotate %12 by %c16_i32 dim 1 : vector<24x256xf32>, i32 -> vector<24x256xf32>
    %14 = vector.extract_strided_slice %1 {offsets = [1, 0], sizes = [1, 256], strides = [1, 1]} : vector<8x256xf32> to vector<1x256xf32>
    %15 = vector.broadcast %14 : vector<1x256xf32> to vector<24x256xf32>
    %16 = arith.mulf %13, %15 : vector<24x256xf32>
    %17 = arith.addf %11, %16 : vector<24x256xf32>
    %18 = vector.extract_strided_slice %5 {offsets = [48, 0], sizes = [24, 256], strides = [1, 1]} : vector<72x256xf32> to vector<24x256xf32>
    %c15_i32 = arith.constant 15 : i32
    %19 = tpu.dynamic_rotate %18 by %c15_i32 dim 1 : vector<24x256xf32>, i32 -> vector<24x256xf32>
    %20 = vector.extract_strided_slice %1 {offsets = [2, 0], sizes = [1, 256], strides = [1, 1]} : vector<8x256xf32> to vector<1x256xf32>
    %21 = vector.broadcast %20 : vector<1x256xf32> to vector<24x256xf32>
    %22 = arith.mulf %19, %21 : vector<24x256xf32>
    %23 = arith.addf %17, %22 : vector<24x256xf32>
    %c1 = arith.constant 1 : index
    %c0_7 = arith.constant 0 : index
    %c0_8 = arith.constant 0 : index
    %24 = vector.load %arg3[%c1, %c0_7, %c0_8] : memref<3x72x60xbf16, #tpu.memory_space<vmem>>, vector<1x72x60xbf16>
    %25 = vector.shape_cast %24 : vector<1x72x60xbf16> to vector<72x60xbf16>
    %cst_9 = arith.constant dense<0.000000e+00> : vector<72x256xf32>
    %26 = tpu.matmul %25, %0, %cst_9 {dimension_numbers = #tpu.dot_dimension_numbers<[1], [0], [0], [1], [0, 0, 1, 1], [], []>} : vector<72x60xbf16>, vector<60x256xbf16>, vector<72x256xf32> -> vector<72x256xf32>
    %27 = vector.extract_strided_slice %26 {offsets = [0, 0], sizes = [24, 256], strides = [1, 1]} : vector<72x256xf32> to vector<24x256xf32>
    %c1_i32 = arith.constant 1 : i32
    %28 = tpu.dynamic_rotate %27 by %c1_i32 dim 1 : vector<24x256xf32>, i32 -> vector<24x256xf32>
    %29 = vector.extract_strided_slice %1 {offsets = [3, 0], sizes = [1, 256], strides = [1, 1]} : vector<8x256xf32> to vector<1x256xf32>
    %30 = vector.broadcast %29 : vector<1x256xf32> to vector<24x256xf32>
    %31 = arith.mulf %28, %30 : vector<24x256xf32>
    %32 = arith.addf %23, %31 : vector<24x256xf32>
    %33 = vector.extract_strided_slice %26 {offsets = [24, 0], sizes = [24, 256], strides = [1, 1]} : vector<72x256xf32> to vector<24x256xf32>
    %34 = arith.addf %32, %33 : vector<24x256xf32>
    %35 = vector.extract_strided_slice %26 {offsets = [48, 0], sizes = [24, 256], strides = [1, 1]} : vector<72x256xf32> to vector<24x256xf32>
    %c255_i32 = arith.constant 255 : i32
    %36 = tpu.dynamic_rotate %35 by %c255_i32 dim 1 : vector<24x256xf32>, i32 -> vector<24x256xf32>
    %37 = vector.extract_strided_slice %1 {offsets = [4, 0], sizes = [1, 256], strides = [1, 1]} : vector<8x256xf32> to vector<1x256xf32>
    %38 = vector.broadcast %37 : vector<1x256xf32> to vector<24x256xf32>
    %39 = arith.mulf %36, %38 : vector<24x256xf32>
    %40 = arith.addf %34, %39 : vector<24x256xf32>
    %c2 = arith.constant 2 : index
    %c0_10 = arith.constant 0 : index
    %c0_11 = arith.constant 0 : index
    %41 = vector.load %arg3[%c2, %c0_10, %c0_11] : memref<3x72x60xbf16, #tpu.memory_space<vmem>>, vector<1x72x60xbf16>
    %42 = vector.shape_cast %41 : vector<1x72x60xbf16> to vector<72x60xbf16>
    %cst_12 = arith.constant dense<0.000000e+00> : vector<72x256xf32>
    %43 = tpu.matmul %42, %0, %cst_12 {dimension_numbers = #tpu.dot_dimension_numbers<[1], [0], [0], [1], [0, 0, 1, 1], [], []>} : vector<72x60xbf16>, vector<60x256xbf16>, vector<72x256xf32> -> vector<72x256xf32>
    %44 = vector.extract_strided_slice %43 {offsets = [0, 0], sizes = [24, 256], strides = [1, 1]} : vector<72x256xf32> to vector<24x256xf32>
    %c241_i32 = arith.constant 241 : i32
    %45 = tpu.dynamic_rotate %44 by %c241_i32 dim 1 : vector<24x256xf32>, i32 -> vector<24x256xf32>
    %46 = vector.extract_strided_slice %1 {offsets = [5, 0], sizes = [1, 256], strides = [1, 1]} : vector<8x256xf32> to vector<1x256xf32>
    %47 = vector.broadcast %46 : vector<1x256xf32> to vector<24x256xf32>
    %48 = arith.mulf %45, %47 : vector<24x256xf32>
    %49 = arith.addf %40, %48 : vector<24x256xf32>
    %50 = vector.extract_strided_slice %43 {offsets = [24, 0], sizes = [24, 256], strides = [1, 1]} : vector<72x256xf32> to vector<24x256xf32>
    %c240_i32 = arith.constant 240 : i32
    %51 = tpu.dynamic_rotate %50 by %c240_i32 dim 1 : vector<24x256xf32>, i32 -> vector<24x256xf32>
    %52 = vector.extract_strided_slice %1 {offsets = [6, 0], sizes = [1, 256], strides = [1, 1]} : vector<8x256xf32> to vector<1x256xf32>
    %53 = vector.broadcast %52 : vector<1x256xf32> to vector<24x256xf32>
    %54 = arith.mulf %51, %53 : vector<24x256xf32>
    %55 = arith.addf %49, %54 : vector<24x256xf32>
    %56 = vector.extract_strided_slice %43 {offsets = [48, 0], sizes = [24, 256], strides = [1, 1]} : vector<72x256xf32> to vector<24x256xf32>
    %c239_i32 = arith.constant 239 : i32
    %57 = tpu.dynamic_rotate %56 by %c239_i32 dim 1 : vector<24x256xf32>, i32 -> vector<24x256xf32>
    %58 = vector.extract_strided_slice %1 {offsets = [7, 0], sizes = [1, 256], strides = [1, 1]} : vector<8x256xf32> to vector<1x256xf32>
    %59 = vector.broadcast %58 : vector<1x256xf32> to vector<24x256xf32>
    %60 = arith.mulf %57, %59 : vector<24x256xf32>
    %61 = arith.addf %55, %60 : vector<24x256xf32>
    %c0_13 = arith.constant 0 : index
    %c0_14 = arith.constant 0 : index
    %62 = vector.load %arg4[%c0_13, %c0_14] : memref<24x1xf32, #tpu.memory_space<vmem>>, vector<24x1xf32>
    %63 = vector.broadcast %62 : vector<24x1xf32> to vector<24x256xf32>
    %64 = arith.addf %61, %63 : vector<24x256xf32>
    %cst_15 = arith.constant 5.000000e-01 : f32
    %65 = vector.broadcast %cst_15 : f32 to vector<24x256xf32>
    %66 = arith.mulf %65, %64 : vector<24x256xf32>
    %cst_16 = arith.constant 0.707106769 : f32
    %67 = vector.broadcast %cst_16 : f32 to vector<24x256xf32>
    %68 = arith.mulf %64, %67 : vector<24x256xf32>
    %69 = math.erf %68 : vector<24x256xf32>
    %cst_17 = arith.constant 1.000000e+00 : f32
    %70 = vector.broadcast %cst_17 : f32 to vector<24x256xf32>
    %71 = arith.addf %70, %69 : vector<24x256xf32>
    %72 = arith.mulf %66, %71 : vector<24x256xf32>
    %c17_i32_18 = arith.constant 17 : i32
    %73 = tpu.dynamic_rotate %72 by %c17_i32_18 dim 1 : vector<24x256xf32>, i32 -> vector<24x256xf32>
    %74 = vector.extract_strided_slice %1 {offsets = [0, 0], sizes = [1, 256], strides = [1, 1]} : vector<8x256xf32> to vector<1x256xf32>
    %75 = vector.broadcast %74 : vector<1x256xf32> to vector<24x256xf32>
    %76 = arith.mulf %73, %75 : vector<24x256xf32>
    %c0_19 = arith.constant 0 : index
    %c0_20 = arith.constant 0 : index
    %77 = vector.load %arg12[%c0_19, %c0_20] : memref<216x256xf32, #tpu.memory_space<vmem>>, vector<24x256xf32>
    tpu.vector_store %arg12[%c0_19, %c0_20], %76 {strides = array<i32>} : memref<216x256xf32, #tpu.memory_space<vmem>>, vector<24x256xf32>,
    %c16_i32_21 = arith.constant 16 : i32
    %78 = tpu.dynamic_rotate %72 by %c16_i32_21 dim 1 : vector<24x256xf32>, i32 -> vector<24x256xf32>
    %79 = vector.extract_strided_slice %1 {offsets = [1, 0], sizes = [1, 256], strides = [1, 1]} : vector<8x256xf32> to vector<1x256xf32>
    %80 = vector.broadcast %79 : vector<1x256xf32> to vector<24x256xf32>
    %81 = arith.mulf %78, %80 : vector<24x256xf32>
    %c24 = arith.constant 24 : index
    %c0_22 = arith.constant 0 : index
    %82 = vector.load %arg12[%c24, %c0_22] : memref<216x256xf32, #tpu.memory_space<vmem>>, vector<24x256xf32>
    tpu.vector_store %arg12[%c24, %c0_22], %81 {strides = array<i32>} : memref<216x256xf32, #tpu.memory_space<vmem>>, vector<24x256xf32>,
    %c15_i32_23 = arith.constant 15 : i32
    %83 = tpu.dynamic_rotate %72 by %c15_i32_23 dim 1 : vector<24x256xf32>, i32 -> vector<24x256xf32>
    %84 = vector.extract_strided_slice %1 {offsets = [2, 0], sizes = [1, 256], strides = [1, 1]} : vector<8x256xf32> to vector<1x256xf32>
    %85 = vector.broadcast %84 : vector<1x256xf32> to vector<24x256xf32>
    %86 = arith.mulf %83, %85 : vector<24x256xf32>
    %c48 = arith.constant 48 : index
    %c0_24 = arith.constant 0 : index
    %87 = vector.load %arg12[%c48, %c0_24] : memref<216x256xf32, #tpu.memory_space<vmem>>, vector<24x256xf32>
    tpu.vector_store %arg12[%c48, %c0_24], %86 {strides = array<i32>} : memref<216x256xf32, #tpu.memory_space<vmem>>, vector<24x256xf32>,
    %c1_i32_25 = arith.constant 1 : i32
    %88 = tpu.dynamic_rotate %72 by %c1_i32_25 dim 1 : vector<24x256xf32>, i32 -> vector<24x256xf32>
    %89 = vector.extract_strided_slice %1 {offsets = [3, 0], sizes = [1, 256], strides = [1, 1]} : vector<8x256xf32> to vector<1x256xf32>
    %90 = vector.broadcast %89 : vector<1x256xf32> to vector<24x256xf32>
    %91 = arith.mulf %88, %90 : vector<24x256xf32>
    %c72 = arith.constant 72 : index
    %c0_26 = arith.constant 0 : index
    %92 = vector.load %arg12[%c72, %c0_26] : memref<216x256xf32, #tpu.memory_space<vmem>>, vector<24x256xf32>
    tpu.vector_store %arg12[%c72, %c0_26], %91 {strides = array<i32>} : memref<216x256xf32, #tpu.memory_space<vmem>>, vector<24x256xf32>,
    %c96 = arith.constant 96 : index
    %c0_27 = arith.constant 0 : index
    %93 = vector.load %arg12[%c96, %c0_27] : memref<216x256xf32, #tpu.memory_space<vmem>>, vector<24x256xf32>
    tpu.vector_store %arg12[%c96, %c0_27], %72 {strides = array<i32>} : memref<216x256xf32, #tpu.memory_space<vmem>>, vector<24x256xf32>,
    %c255_i32_28 = arith.constant 255 : i32
    %94 = tpu.dynamic_rotate %72 by %c255_i32_28 dim 1 : vector<24x256xf32>, i32 -> vector<24x256xf32>
    %95 = vector.extract_strided_slice %1 {offsets = [4, 0], sizes = [1, 256], strides = [1, 1]} : vector<8x256xf32> to vector<1x256xf32>
    %96 = vector.broadcast %95 : vector<1x256xf32> to vector<24x256xf32>
    %97 = arith.mulf %94, %96 : vector<24x256xf32>
    %c120 = arith.constant 120 : index
    %c0_29 = arith.constant 0 : index
    %98 = vector.load %arg12[%c120, %c0_29] : memref<216x256xf32, #tpu.memory_space<vmem>>, vector<24x256xf32>
    tpu.vector_store %arg12[%c120, %c0_29], %97 {strides = array<i32>} : memref<216x256xf32, #tpu.memory_space<vmem>>, vector<24x256xf32>,
    %c241_i32_30 = arith.constant 241 : i32
    %99 = tpu.dynamic_rotate %72 by %c241_i32_30 dim 1 : vector<24x256xf32>, i32 -> vector<24x256xf32>
    %100 = vector.extract_strided_slice %1 {offsets = [5, 0], sizes = [1, 256], strides = [1, 1]} : vector<8x256xf32> to vector<1x256xf32>
    %101 = vector.broadcast %100 : vector<1x256xf32> to vector<24x256xf32>
    %102 = arith.mulf %99, %101 : vector<24x256xf32>
    %c144 = arith.constant 144 : index
    %c0_31 = arith.constant 0 : index
    %103 = vector.load %arg12[%c144, %c0_31] : memref<216x256xf32, #tpu.memory_space<vmem>>, vector<24x256xf32>
    tpu.vector_store %arg12[%c144, %c0_31], %102 {strides = array<i32>} : memref<216x256xf32, #tpu.memory_space<vmem>>, vector<24x256xf32>,
    %c240_i32_32 = arith.constant 240 : i32
    %104 = tpu.dynamic_rotate %72 by %c240_i32_32 dim 1 : vector<24x256xf32>, i32 -> vector<24x256xf32>
    %105 = vector.extract_strided_slice %1 {offsets = [6, 0], sizes = [1, 256], strides = [1, 1]} : vector<8x256xf32> to vector<1x256xf32>
    %106 = vector.broadcast %105 : vector<1x256xf32> to vector<24x256xf32>
    %107 = arith.mulf %104, %106 : vector<24x256xf32>
    %c168 = arith.constant 168 : index
    %c0_33 = arith.constant 0 : index
    %108 = vector.load %arg12[%c168, %c0_33] : memref<216x256xf32, #tpu.memory_space<vmem>>, vector<24x256xf32>
    tpu.vector_store %arg12[%c168, %c0_33], %107 {strides = array<i32>} : memref<216x256xf32, #tpu.memory_space<vmem>>, vector<24x256xf32>,
    %c239_i32_34 = arith.constant 239 : i32
    %109 = tpu.dynamic_rotate %72 by %c239_i32_34 dim 1 : vector<24x256xf32>, i32 -> vector<24x256xf32>
    %110 = vector.extract_strided_slice %1 {offsets = [7, 0], sizes = [1, 256], strides = [1, 1]} : vector<8x256xf32> to vector<1x256xf32>
    %111 = vector.broadcast %110 : vector<1x256xf32> to vector<24x256xf32>
    %112 = arith.mulf %109, %111 : vector<24x256xf32>
    %c192 = arith.constant 192 : index
    %c0_35 = arith.constant 0 : index
    %113 = vector.load %arg12[%c192, %c0_35] : memref<216x256xf32, #tpu.memory_space<vmem>>, vector<24x256xf32>
    tpu.vector_store %arg12[%c192, %c0_35], %112 {strides = array<i32>} : memref<216x256xf32, #tpu.memory_space<vmem>>, vector<24x256xf32>,
    %c0_36 = arith.constant 0 : index
    %c0_37 = arith.constant 0 : index
    %114 = vector.load %arg5[%c0_36, %c0_37] : memref<60x216xbf16, #tpu.memory_space<vmem>>, vector<60x216xbf16>
    %c0_38 = arith.constant 0 : index
    %c0_39 = arith.constant 0 : index
    %115 = vector.load %arg12[%c0_38, %c0_39] : memref<216x256xf32, #tpu.memory_space<vmem>>, vector<216x256xf32>
    %116 = arith.truncf %115 : vector<216x256xf32> to vector<216x256xbf16>
    %cst_40 = arith.constant dense<0.000000e+00> : vector<60x256xf32>
    %117 = tpu.matmul %114, %116, %cst_40 {dimension_numbers = #tpu.dot_dimension_numbers<[1], [0], [0], [1], [0, 0, 1, 1], [], []>} : vector<60x216xbf16>, vector<216x256xbf16>, vector<60x256xf32> -> vector<60x256xf32>
    %c0_41 = arith.constant 0 : index
    %c0_42 = arith.constant 0 : index
    %118 = vector.load %arg6[%c0_41, %c0_42] : memref<60x1xf32, #tpu.memory_space<vmem>>, vector<60x1xf32>
    %119 = vector.broadcast %118 : vector<60x1xf32> to vector<60x256xf32>
    %120 = arith.addf %117, %119 : vector<60x256xf32>
    %cst_43 = arith.constant dense<0.000000e+00> : vector<60xf32>
    %121 = vector.multi_reduction <add>, %120, %cst_43 [1] : vector<60x256xf32> to vector<60xf32>
    %122 = vector.shape_cast %121 : vector<60xf32> to vector<60x1xf32>
    %cst_44 = arith.constant 2.560000e+02 : f32
    %123 = vector.broadcast %cst_44 : f32 to vector<60x1xf32>
    %124 = arith.divf %122, %123 : vector<60x1xf32>
    %c0_45 = arith.constant 0 : index
    %c0_46 = arith.constant 0 : index
    %125 = vector.load %arg7[%c0_45, %c0_46] : memref<60x2xf32, #tpu.memory_space<vmem>>, vector<60x2xf32>
    %126 = vector.broadcast %124 : vector<60x1xf32> to vector<60x2xf32>
    %127 = arith.mulf %126, %125 : vector<60x2xf32>
    %cst_47 = arith.constant dense<0.000000e+00> : vector<2xf32>
    %128 = vector.multi_reduction <add>, %127, %cst_47 [0] : vector<60x2xf32> to vector<2xf32>
    %129 = vector.shape_cast %128 : vector<2xf32> to vector<1x2xf32>
    %c0_48 = arith.constant 0 : index
    %c0_49 = arith.constant 0 : index
    %130 = vector.load %arg8[%c0_48, %c0_49] : memref<1x2xf32, #tpu.memory_space<vmem>>, vector<1x2xf32>
    %131 = arith.addf %129, %130 : vector<1x2xf32>
    %cst_50 = arith.constant 0.000000e+00 : f32
    %132 = vector.broadcast %cst_50 : f32 to vector<1x2xf32>
    %133 = arith.maximumf %131, %132 : vector<1x2xf32>
    %c0_51 = arith.constant 0 : index
    %c0_52 = arith.constant 0 : index
    %134 = vector.load %arg9[%c0_51, %c0_52] : memref<60x2xf32, #tpu.memory_space<vmem>>, vector<60x2xf32>
    %135 = vector.broadcast %133 : vector<1x2xf32> to vector<60x2xf32>
    %136 = arith.mulf %134, %135 : vector<60x2xf32>
    %cst_53 = arith.constant dense<0.000000e+00> : vector<60xf32>
    %137 = vector.multi_reduction <add>, %136, %cst_53 [1] : vector<60x2xf32> to vector<60xf32>
    %138 = vector.shape_cast %137 : vector<60xf32> to vector<60x1xf32>
    %c0_54 = arith.constant 0 : index
    %c0_55 = arith.constant 0 : index
    %139 = vector.load %arg10[%c0_54, %c0_55] : memref<60x1xf32, #tpu.memory_space<vmem>>, vector<60x1xf32>
    %140 = arith.addf %138, %139 : vector<60x1xf32>
    %141 = arith.negf %140 : vector<60x1xf32>
    %142 = math.exp %141 : vector<60x1xf32>
    %cst_56 = arith.constant 1.000000e+00 : f32
    %143 = vector.broadcast %cst_56 : f32 to vector<60x1xf32>
    %144 = arith.addf %143, %142 : vector<60x1xf32>
    %145 = arith.divf %143, %144 : vector<60x1xf32>
    %146 = vector.broadcast %145 : vector<60x1xf32> to vector<60x256xf32>
    %147 = arith.mulf %120, %146 : vector<60x256xf32>
    %c0_57 = arith.constant 0 : index
    %c0_58 = arith.constant 0 : index
    %148 = vector.load %arg11[%c0_57, %c0_58] : memref<60x256xf32, #tpu.memory_space<vmem>>, vector<60x256xf32>
    tpu.vector_store %arg11[%c0_57, %c0_58], %147 {strides = array<i32>} : memref<60x256xf32, #tpu.memory_space<vmem>>, vector<60x256xf32>,
    return
  }
  func.func @transform_0(%arg0: i32) -> (i32, i32) {
    %c0_i32 = arith.constant 0 : i32
    %c0_i32_0 = arith.constant 0 : i32
    return %c0_i32, %arg0 : i32, i32
  }
  func.func @transform_1(%arg0: i32) -> (i32, i32) {
    %c0_i32 = arith.constant 0 : i32
    %c0_i32_0 = arith.constant 0 : i32
    %c0_i32_1 = arith.constant 0 : i32
    return %c0_i32, %c0_i32_0 : i32, i32
  }
  func.func @transform_2(%arg0: i32) -> (i32, i32, i32) {
    %c0_i32 = arith.constant 0 : i32
    %c0_i32_0 = arith.constant 0 : i32
    %c0_i32_1 = arith.constant 0 : i32
    %c0_i32_2 = arith.constant 0 : i32
    return %c0_i32, %c0_i32_0, %c0_i32_1 : i32, i32, i32
  }
  func.func @transform_3(%arg0: i32) -> (i32, i32) {
    %c0_i32 = arith.constant 0 : i32
    %c0_i32_0 = arith.constant 0 : i32
    %c0_i32_1 = arith.constant 0 : i32
    return %c0_i32, %c0_i32_0 : i32, i32
  }
  func.func @transform_4(%arg0: i32) -> (i32, i32) {
    %c0_i32 = arith.constant 0 : i32
    %c0_i32_0 = arith.constant 0 : i32
    %c0_i32_1 = arith.constant 0 : i32
    return %c0_i32, %c0_i32_0 : i32, i32
  }
  func.func @transform_5(%arg0: i32) -> (i32, i32) {
    %c0_i32 = arith.constant 0 : i32
    %c0_i32_0 = arith.constant 0 : i32
    %c0_i32_1 = arith.constant 0 : i32
    return %c0_i32, %c0_i32_0 : i32, i32
  }
  func.func @transform_6(%arg0: i32) -> (i32, i32) {
    %c0_i32 = arith.constant 0 : i32
    %c0_i32_0 = arith.constant 0 : i32
    %c0_i32_1 = arith.constant 0 : i32
    return %c0_i32, %c0_i32_0 : i32, i32
  }
  func.func @transform_7(%arg0: i32) -> (i32, i32) {
    %c0_i32 = arith.constant 0 : i32
    %c0_i32_0 = arith.constant 0 : i32
    %c0_i32_1 = arith.constant 0 : i32
    return %c0_i32, %c0_i32_0 : i32, i32
  }
  func.func @transform_8(%arg0: i32) -> (i32, i32) {
    %c0_i32 = arith.constant 0 : i32
    %c0_i32_0 = arith.constant 0 : i32
    %c0_i32_1 = arith.constant 0 : i32
    return %c0_i32, %c0_i32_0 : i32, i32
  }
  func.func @transform_9(%arg0: i32) -> (i32, i32) {
    %c0_i32 = arith.constant 0 : i32
    %c0_i32_0 = arith.constant 0 : i32
    %c0_i32_1 = arith.constant 0 : i32
    return %c0_i32, %c0_i32_0 : i32, i32
  }
  func.func @transform_10(%arg0: i32) -> (i32, i32) {
    %c0_i32 = arith.constant 0 : i32
    %c0_i32_0 = arith.constant 0 : i32
    return %c0_i32, %arg0 : i32, i32
  }
}

</mosaic_0001>

<llo_original>
// kernel: tpu_custom_call.1
$region0: #{tpu_custom_call.1}
  #allocation0 [shape = 'u32[]', space=smem, size = 0x4, offset = 0x4, fixed_abs, tag = 'smem constant byte address 0x4 - core index']
  #allocation1 [shape = 'u32[144,128]{1,0:T(1,128)}', space=vmem, size = 0x12000, scoped, tag = 'internal scratch']
  #allocation2 [shape = 'f32[216,256]{1,0:T(8,128)}', space=vmem, size = 0x36000, scoped, tag = 'scratch operand']
  %s0 = inlined_call_operand.vmem [shape: bf16[60,512], index: 0, kind: input, shape index: {}]
  %s1 = inlined_call_operand.vmem [shape: f32[8,256], index: 1, kind: input, shape index: {}]
  %s2 = inlined_call_operand.vmem [shape: bf16[3,72,60], index: 2, kind: input, shape index: {}]
  %s3 = inlined_call_operand.vmem [shape: f32[24,1], index: 3, kind: input, shape index: {}]
  %s4 = inlined_call_operand.vmem [shape: bf16[60,216], index: 4, kind: input, shape index: {}]
  %s5 = inlined_call_operand.vmem [shape: f32[60,1], index: 5, kind: input, shape index: {}]
  %s6 = inlined_call_operand.vmem [shape: f32[60,2], index: 6, kind: input, shape index: {}]
  %s7 = inlined_call_operand.vmem [shape: f32[1,2], index: 7, kind: input, shape index: {}]
  %s8 = inlined_call_operand.vmem [shape: f32[60,2], index: 8, kind: input, shape index: {}]
  %s9 = inlined_call_operand.vmem [shape: f32[60,1], index: 9, kind: input, shape index: {}]
  %s10 = inlined_call_operand.hbm [shape: f32[60,512], index: 10, kind: output, shape index: {}]
  %s11 = sld [smem:[#allocation0]]
  $region111: #{tpu_custom_call.1} parent=0
    _
  %s13 = ssub.s32 1, %s11
  %s14 = scalar_select 0, %s13, %s11
  $region1: #{tpu_custom_call.1} parent=0
    #allocation3 [shape = 'u8[65536]{0}', space=vmem, size = 0x10000, scoped, tag = 'input window, operand 0']
    #allocation4 [shape = 'u8[131072]{0}', space=vmem, size = 0x20000, scoped, tag = 'output window, operand 0']
    #allocation5 [shape = 's32[2]{0}', space=sflag, size = 0x8, scoped, tag = 'scoped memory for tpu_custom_call.1']
    %15 = vsyncpa [#allocation5], 0
    %s16 = scalar_lea.sflag [#allocation5], 1
    %17 = vsyncpa %s16, 0
    loop: start=0, step=1, limit=4
    $region2: #{tpu_custom_call.1} parent=1 // loop_pre_header
      _
    $region3: #{tpu_custom_call.1} parent=1 // loop_header
      %s19 = sphi 0, %s23
      %p20 = scmp.ge.s32.totalorder %s19, 4
      %s29 = sphi 0, %s31
      %s32 = sphi 0, %s29
      %s33 = sphi 0, %s32
      %s49 = sphi 0, %s33
      %s53 = sphi 0, %s53
      %s55 = sphi 0, %s53
      %s56 = sphi 0, %s55
      %s70 = sphi 0, %s56
      %s74 = sphi 0, %s74
      %s76 = sphi 0, %s74
      %s77 = sphi 0, %s76
      %s91 = sphi 0, %s77
      %s95 = sphi 0, %s95
      %s97 = sphi 0, %s95
      %s98 = sphi 0, %s97
      %s112 = sphi 0, %s98
      %s116 = sphi 0, %s116
      %s118 = sphi 0, %s116
      %s119 = sphi 0, %s118
      %s133 = sphi 0, %s119
      %s137 = sphi 0, %s137
      %s139 = sphi 0, %s137
      %s140 = sphi 0, %s139
      %s154 = sphi 0, %s140
      %s158 = sphi 0, %s158
      %s160 = sphi 0, %s158
      %s161 = sphi 0, %s160
      %s175 = sphi 0, %s161
      %s179 = sphi 0, %s179
      %s181 = sphi 0, %s179
      %s182 = sphi 0, %s181
      %s196 = sphi 0, %s182
      %s200 = sphi 0, %s200
      %s202 = sphi 0, %s200
      %s203 = sphi 0, %s202
      %s217 = sphi 0, %s203
      %s221 = sphi 0, %s221
      %s223 = sphi 0, %s221
      %s224 = sphi 0, %s223
      %s238 = sphi 0, %s224
      %s244 = sphi 0, %s246
      %s247 = sphi 0, %s244
      %s248 = sphi 0, %s247
      %s264 = sphi 0, %s248
    $region4: #{tpu_custom_call.1} parent=1 // loop_header_branch
      %22 = sbr.rel (%p20) target = $region8
    $region5: #{tpu_custom_call.1} parent=1 // loop_body
      %s24 = ssub.s32 %s19, 1
      %s25 = ssub.s32 %s19, 2
      %s26 = sadd.s32 %s19, 1
      %s27 = ssub.s32 %s19, %s26
      %p28 = scmp.eq.s32.totalorder %s27, 0
      %s30 = sadd.s32 %s29, 1
      %s31 = scalar_select %p28, %s29, %s30
      %p34 = pneg %p28
      %p35 = scmp.eq.s32.totalorder %s19, 1
      %p36 = por %p34, %p35
      %p37 = scmp.ne.s32.totalorder %s29, %s32
      %p38 = scmp.eq.s32.totalorder %s19, 0
      %p39 = por %p37, %p38
      %p40 = scmp.ne.s32.totalorder %s29, %s32
      %p41 = scmp.eq.s32.totalorder %s24, 1
      %p42 = por %p40, %p41
      %p43 = scmp.ne.s32.totalorder %s32, %s33
      %p44 = scmp.eq.s32.totalorder %s24, 0
      %p45 = por %p43, %p44
      %p46 = scmp.ne.s32.totalorder %s32, %s33
      %p47 = scmp.eq.s32.totalorder %s25, 1
      %p48 = por %p46, %p47
      %p50 = scmp.ne.s32.totalorder %s33, %s49
      %p51 = scmp.eq.s32.totalorder %s25, 0
      %p52 = por %p50, %p51
      %s54 = sadd.s32 %s53, 1
      %p57 = scmp.eq.s32.totalorder %s19, 1
      %p58 = scmp.ne.s32.totalorder %s53, %s55
      %p59 = scmp.eq.s32.totalorder %s19, 0
      %p60 = por %p58, %p59
      %p61 = scmp.ne.s32.totalorder %s53, %s55
      %p62 = scmp.eq.s32.totalorder %s24, 1
      %p63 = por %p61, %p62
      %p64 = scmp.ne.s32.totalorder %s55, %s56
      %p65 = scmp.eq.s32.totalorder %s24, 0
      %p66 = por %p64, %p65
      %p67 = scmp.ne.s32.totalorder %s55, %s56
      %p68 = scmp.eq.s32.totalorder %s25, 1
      %p69 = por %p67, %p68
      %p71 = scmp.ne.s32.totalorder %s56, %s70
      %p72 = scmp.eq.s32.totalorder %s25, 0
      %p73 = por %p71, %p72
      %s75 = sadd.s32 %s74, 1
      %p78 = scmp.eq.s32.totalorder %s19, 1
      %p79 = scmp.ne.s32.totalorder %s74, %s76
      %p80 = scmp.eq.s32.totalorder %s19, 0
      %p81 = por %p79, %p80
      %p82 = scmp.ne.s32.totalorder %s74, %s76
      %p83 = scmp.eq.s32.totalorder %s24, 1
      %p84 = por %p82, %p83
      %p85 = scmp.ne.s32.totalorder %s76, %s77
      %p86 = scmp.eq.s32.totalorder %s24, 0
      %p87 = por %p85, %p86
      %p88 = scmp.ne.s32.totalorder %s76, %s77
      %p89 = scmp.eq.s32.totalorder %s25, 1
      %p90 = por %p88, %p89
      %p92 = scmp.ne.s32.totalorder %s77, %s91
      %p93 = scmp.eq.s32.totalorder %s25, 0
      %p94 = por %p92, %p93
      %s96 = sadd.s32 %s95, 1
      %p99 = scmp.eq.s32.totalorder %s19, 1
      %p100 = scmp.ne.s32.totalorder %s95, %s97
      %p101 = scmp.eq.s32.totalorder %s19, 0
      %p102 = por %p100, %p101
      %p103 = scmp.ne.s32.totalorder %s95, %s97
      %p104 = scmp.eq.s32.totalorder %s24, 1
      %p105 = por %p103, %p104
      %p106 = scmp.ne.s32.totalorder %s97, %s98
      %p107 = scmp.eq.s32.totalorder %s24, 0
      %p108 = por %p106, %p107
      %p109 = scmp.ne.s32.totalorder %s97, %s98
      %p110 = scmp.eq.s32.totalorder %s25, 1
      %p111 = por %p109, %p110
      %p113 = scmp.ne.s32.totalorder %s98, %s112
      %p114 = scmp.eq.s32.totalorder %s25, 0
      %p115 = por %p113, %p114
      %s117 = sadd.s32 %s116, 1
      %p120 = scmp.eq.s32.totalorder %s19, 1
      %p121 = scmp.ne.s32.totalorder %s116, %s118
      %p122 = scmp.eq.s32.totalorder %s19, 0
      %p123 = por %p121, %p122
      %p124 = scmp.ne.s32.totalorder %s116, %s118
      %p125 = scmp.eq.s32.totalorder %s24, 1
      %p126 = por %p124, %p125
      %p127 = scmp.ne.s32.totalorder %s118, %s119
      %p128 = scmp.eq.s32.totalorder %s24, 0
      %p129 = por %p127, %p128
      %p130 = scmp.ne.s32.totalorder %s118, %s119
      %p131 = scmp.eq.s32.totalorder %s25, 1
      %p132 = por %p130, %p131
      %p134 = scmp.ne.s32.totalorder %s119, %s133
      %p135 = scmp.eq.s32.totalorder %s25, 0
      %p136 = por %p134, %p135
      %s138 = sadd.s32 %s137, 1
      %p141 = scmp.eq.s32.totalorder %s19, 1
      %p142 = scmp.ne.s32.totalorder %s137, %s139
      %p143 = scmp.eq.s32.totalorder %s19, 0
      %p144 = por %p142, %p143
      %p145 = scmp.ne.s32.totalorder %s137, %s139
      %p146 = scmp.eq.s32.totalorder %s24, 1
      %p147 = por %p145, %p146
      %p148 = scmp.ne.s32.totalorder %s139, %s140
      %p149 = scmp.eq.s32.totalorder %s24, 0
      %p150 = por %p148, %p149
      %p151 = scmp.ne.s32.totalorder %s139, %s140
      %p152 = scmp.eq.s32.totalorder %s25, 1
      %p153 = por %p151, %p152
      %p155 = scmp.ne.s32.totalorder %s140, %s154
      %p156 = scmp.eq.s32.totalorder %s25, 0
      %p157 = por %p155, %p156
      %s159 = sadd.s32 %s158, 1
      %p162 = scmp.eq.s32.totalorder %s19, 1
      %p163 = scmp.ne.s32.totalorder %s158, %s160
      %p164 = scmp.eq.s32.totalorder %s19, 0
      %p165 = por %p163, %p164
      %p166 = scmp.ne.s32.totalorder %s158, %s160
      %p167 = scmp.eq.s32.totalorder %s24, 1
      %p168 = por %p166, %p167
      %p169 = scmp.ne.s32.totalorder %s160, %s161
      %p170 = scmp.eq.s32.totalorder %s24, 0
      %p171 = por %p169, %p170
      %p172 = scmp.ne.s32.totalorder %s160, %s161
      %p173 = scmp.eq.s32.totalorder %s25, 1
      %p174 = por %p172, %p173
      %p176 = scmp.ne.s32.totalorder %s161, %s175
      %p177 = scmp.eq.s32.totalorder %s25, 0
      %p178 = por %p176, %p177
      %s180 = sadd.s32 %s179, 1
      %p183 = scmp.eq.s32.totalorder %s19, 1
      %p184 = scmp.ne.s32.totalorder %s179, %s181
      %p185 = scmp.eq.s32.totalorder %s19, 0
      %p186 = por %p184, %p185
      %p187 = scmp.ne.s32.totalorder %s179, %s181
      %p188 = scmp.eq.s32.totalorder %s24, 1
      %p189 = por %p187, %p188
      %p190 = scmp.ne.s32.totalorder %s181, %s182
      %p191 = scmp.eq.s32.totalorder %s24, 0
      %p192 = por %p190, %p191
      %p193 = scmp.ne.s32.totalorder %s181, %s182
      %p194 = scmp.eq.s32.totalorder %s25, 1
      %p195 = por %p193, %p194
      %p197 = scmp.ne.s32.totalorder %s182, %s196
      %p198 = scmp.eq.s32.totalorder %s25, 0
      %p199 = por %p197, %p198
      %s201 = sadd.s32 %s200, 1
      %p204 = scmp.eq.s32.totalorder %s19, 1
      %p205 = scmp.ne.s32.totalorder %s200, %s202
      %p206 = scmp.eq.s32.totalorder %s19, 0
      %p207 = por %p205, %p206
      %p208 = scmp.ne.s32.totalorder %s200, %s202
      %p209 = scmp.eq.s32.totalorder %s24, 1
      %p210 = por %p208, %p209
      %p211 = scmp.ne.s32.totalorder %s202, %s203
      %p212 = scmp.eq.s32.totalorder %s24, 0
      %p213 = por %p211, %p212
      %p214 = scmp.ne.s32.totalorder %s202, %s203
      %p215 = scmp.eq.s32.totalorder %s25, 1
      %p216 = por %p214, %p215
      %p218 = scmp.ne.s32.totalorder %s203, %s217
      %p219 = scmp.eq.s32.totalorder %s25, 0
      %p220 = por %p218, %p219
      %s222 = sadd.s32 %s221, 1
      %p225 = scmp.eq.s32.totalorder %s19, 1
      %p226 = scmp.ne.s32.totalorder %s221, %s223
      %p227 = scmp.eq.s32.totalorder %s19, 0
      %p228 = por %p226, %p227
      %p229 = scmp.ne.s32.totalorder %s221, %s223
      %p230 = scmp.eq.s32.totalorder %s24, 1
      %p231 = por %p229, %p230
      %p232 = scmp.ne.s32.totalorder %s223, %s224
      %p233 = scmp.eq.s32.totalorder %s24, 0
      %p234 = por %p232, %p233
      %p235 = scmp.ne.s32.totalorder %s223, %s224
      %p236 = scmp.eq.s32.totalorder %s25, 1
      %p237 = por %p235, %p236
      %p239 = scmp.ne.s32.totalorder %s224, %s238
      %p240 = scmp.eq.s32.totalorder %s25, 0
      %p241 = por %p239, %p240
      %s242 = ssub.s32 %s19, %s26
      %p243 = scmp.eq.s32.totalorder %s242, 0
      %s245 = sadd.s32 %s244, 1
      %s246 = scalar_select %p243, %s244, %s245
      %p249 = pneg %p243
      %p250 = scmp.eq.s32.totalorder %s19, 1
      %p251 = por %p249, %p250
      %p252 = scmp.ne.s32.totalorder %s244, %s247
      %p253 = scmp.eq.s32.totalorder %s19, 0
      %p254 = por %p252, %p253
      %p255 = scmp.ne.s32.totalorder %s244, %s247
      %p256 = scmp.eq.s32.totalorder %s24, 1
      %p257 = por %p255, %p256
      %p258 = scmp.ne.s32.totalorder %s247, %s248
      %p259 = scmp.eq.s32.totalorder %s24, 0
      %p260 = por %p258, %p259
      %p261 = scmp.ne.s32.totalorder %s247, %s248
      %p262 = scmp.eq.s32.totalorder %s25, 1
      %p263 = por %p261, %p262
      %p265 = scmp.ne.s32.totalorder %s248, %s264
      %p266 = scmp.eq.s32.totalorder %s25, 0
      %p267 = por %p265, %p266
      %p268 = scmp.le.s32.totalorder 1, %s19
      %p269 = scmp.lt.s32.totalorder %s19, 3
      %p270 = pnand %p268, %p269
      %p271 = pneg %p270
      // Predicated region
      $region9: #{tpu_custom_call.1} parent=5 // pred_check
        _
      $region10: #{tpu_custom_call.1} parent=5 // pred_check_branch
        %273 = sbr.rel (%p270) target = $region12
      $region11: #{tpu_custom_call.1} parent=5 // pred_region
        %s274 = ssub.s32 %s19, 1
        // Predicated region
        $region13: #{tpu_custom_call.1} parent=11 // pred_check
          %p275 = pneg %p66
        $region14: #{tpu_custom_call.1} parent=11 // pred_check_branch
          %277 = sbr.rel (%p275) target = $region16
        $region15: #{tpu_custom_call.1} parent=11 // pred_region
          _
        $region16: #{tpu_custom_call.1} parent=11 // pred_fallthru
          _
        // Predicated region
        $region17: #{tpu_custom_call.1} parent=11 // pred_check
          %p278 = pneg %p87
        $region18: #{tpu_custom_call.1} parent=11 // pred_check_branch
          %280 = sbr.rel (%p278) target = $region20
        $region19: #{tpu_custom_call.1} parent=11 // pred_region
          _
        $region20: #{tpu_custom_call.1} parent=11 // pred_fallthru
          _
        // Predicated region
        $region21: #{tpu_custom_call.1} parent=11 // pred_check
          %p281 = pneg %p108
        $region22: #{tpu_custom_call.1} parent=11 // pred_check_branch
          %283 = sbr.rel (%p281) target = $region24
        $region23: #{tpu_custom_call.1} parent=11 // pred_region
          _
        $region24: #{tpu_custom_call.1} parent=11 // pred_fallthru
          _
        // Predicated region
        $region25: #{tpu_custom_call.1} parent=11 // pred_check
          %p284 = pneg %p129
        $region26: #{tpu_custom_call.1} parent=11 // pred_check_branch
          %286 = sbr.rel (%p284) target = $region28
        $region27: #{tpu_custom_call.1} parent=11 // pred_region
          _
        $region28: #{tpu_custom_call.1} parent=11 // pred_fallthru
          _
        // Predicated region
        $region29: #{tpu_custom_call.1} parent=11 // pred_check
          %p287 = pneg %p150
        $region30: #{tpu_custom_call.1} parent=11 // pred_check_branch
          %289 = sbr.rel (%p287) target = $region32
        $region31: #{tpu_custom_call.1} parent=11 // pred_region
          _
        $region32: #{tpu_custom_call.1} parent=11 // pred_fallthru
          _
        // Predicated region
        $region33: #{tpu_custom_call.1} parent=11 // pred_check
          %p290 = pneg %p171
        $region34: #{tpu_custom_call.1} parent=11 // pred_check_branch
          %292 = sbr.rel (%p290) target = $region36
        $region35: #{tpu_custom_call.1} parent=11 // pred_region
          _
        $region36: #{tpu_custom_call.1} parent=11 // pred_fallthru
          _
        // Predicated region
        $region37: #{tpu_custom_call.1} parent=11 // pred_check
          %p293 = pneg %p192
        $region38: #{tpu_custom_call.1} parent=11 // pred_check_branch
          %295 = sbr.rel (%p293) target = $region40
        $region39: #{tpu_custom_call.1} parent=11 // pred_region
          _
        $region40: #{tpu_custom_call.1} parent=11 // pred_fallthru
          _
        // Predicated region
        $region41: #{tpu_custom_call.1} parent=11 // pred_check
          %p296 = pneg %p213
        $region42: #{tpu_custom_call.1} parent=11 // pred_check_branch
          %298 = sbr.rel (%p296) target = $region44
        $region43: #{tpu_custom_call.1} parent=11 // pred_region
          _
        $region44: #{tpu_custom_call.1} parent=11 // pred_fallthru
          _
        // Predicated region
        $region45: #{tpu_custom_call.1} parent=11 // pred_check
          %p299 = pneg %p234
        $region46: #{tpu_custom_call.1} parent=11 // pred_check_branch
          %301 = sbr.rel (%p299) target = $region48
        $region47: #{tpu_custom_call.1} parent=11 // pred_region
          _
        $region48: #{tpu_custom_call.1} parent=11 // pred_fallthru
          _
      $region12: #{tpu_custom_call.1} parent=5 // pred_fallthru
        _
      %p302 = scmp.lt.s32.totalorder %s19, 2
      // Predicated region
      $region49: #{tpu_custom_call.1} parent=5 // pred_check
        %p303 = pneg %p302
      $region50: #{tpu_custom_call.1} parent=5 // pred_check_branch
        %305 = sbr.rel (%p303) target = $region52
      $region51: #{tpu_custom_call.1} parent=5 // pred_region
        // Predicated region
        $region53: #{tpu_custom_call.1} parent=51 // pred_check
          %p306 = pneg %p39
        $region54: #{tpu_custom_call.1} parent=51 // pred_check_branch
          %308 = sbr.rel (%p306) target = $region56
        $region55: #{tpu_custom_call.1} parent=51 // pred_region
          %s309 = sand.u32 %s29, 1
          %s310 = sand.u32 %s29, 1
          %s311 = smul.addr %s310, 64
          %s312 = scalar_lea.vmem [#allocation3], %s311
          %s313 = smul.u32 2, %s19
          %s314 = smul.addr %s313, 4
          %s315 = scalar_lea.vmem %s0, %s314
          // Predicated region
          $region57: #{tpu_custom_call.1} parent=55 // pred_check
            _
          $region58: #{tpu_custom_call.1} parent=55 // pred_check_branch
            %317 = sbr.rel (0) target = $region60
          $region59: #{tpu_custom_call.1} parent=55 // pred_region
            // Predicated region
            $region61: #{tpu_custom_call.1} parent=59 // pred_check
              _
            $region62: #{tpu_custom_call.1} parent=59 // pred_check_branch
              %319 = sbr.rel (0) target = $region64
            $region63: #{tpu_custom_call.1} parent=59 // pred_region
              // Predicated region
              $region76: #{tpu_custom_call.1} parent=63 // pred_check
                _
              $region77: #{tpu_custom_call.1} parent=63 // pred_check_branch
                %349 = sbr.rel (0) target = $region79
              $region78: #{tpu_custom_call.1} parent=63 // pred_region
                loop: start=0, step=1, limit=1
                $region80: #{tpu_custom_call.1} parent=78 // loop_pre_header
                  _
                $region81: #{tpu_custom_call.1} parent=78 // loop_header
                  %s351 = sphi 0, %s355
                  %p352 = scmp.ge.s32.totalorder %s351, 1
                  %s356 = sphi %s315, %s315
                  %s357 = sphi %s312, %s312
                $region82: #{tpu_custom_call.1} parent=78 // loop_header_branch
                  %354 = sbr.rel (%p352) target = $region86
                $region83: #{tpu_custom_call.1} parent=78 // loop_body
                  %v358 = vld [vmem:[%s356] sm:$0xff]
                  %359 = vst [vmem:[%s357] sm:$0xff] %v358
                  %v360 = vld [vmem:[%s356 + $0x10] sm:$0xff]
                  %361 = vst [vmem:[%s357 + $0x8] sm:$0xff] %v360
                  %v362 = vld [vmem:[%s356 + $0x20] sm:$0xff]
                  %363 = vst [vmem:[%s357 + $0x10] sm:$0xff] %v362
                  %v364 = vld [vmem:[%s356 + $0x30] sm:$0xff]
                  %365 = vst [vmem:[%s357 + $0x18] sm:$0xff] %v364
                  %v366 = vld [vmem:[%s356 + $0x40] sm:$0xff]
                  %367 = vst [vmem:[%s357 + $0x20] sm:$0xff] %v366
                  %v368 = vld [vmem:[%s356 + $0x50] sm:$0xff]
                  %369 = vst [vmem:[%s357 + $0x28] sm:$0xff] %v368
                  %v370 = vld [vmem:[%s356 + $0x60] sm:$0xff]
                  %371 = vst [vmem:[%s357 + $0x30] sm:$0xff] %v370
                  %v372 = vld [vmem:[%s356 + $0x70] sm:$0xff]
                  %373 = vst [vmem:[%s357 + $0x38] sm:$0xff] %v372
                $region84: #{tpu_custom_call.1} parent=78 // loop_footer
                  %s355 = sadd.s32 1, %s351
                $region85: #{tpu_custom_call.1} parent=78 // loop_footer_branch
                  %350 = sbr.rel target = $region81
                $region86: #{tpu_custom_call.1} parent=78 // loop_exit
                  _
              $region79: #{tpu_custom_call.1} parent=63 // pred_fallthru
                _
              // Predicated region
              $region87: #{tpu_custom_call.1} parent=63 // pred_check
                _
              $region88: #{tpu_custom_call.1} parent=63 // pred_check_branch
                %375 = sbr.rel target = $region90
              $region89: #{tpu_custom_call.1} parent=63 // pred_region
                _
              $region90: #{tpu_custom_call.1} parent=63 // pred_fallthru
                _
            $region64: #{tpu_custom_call.1} parent=59 // pred_fallthru
              _
            // Predicated region
            $region65: #{tpu_custom_call.1} parent=59 // pred_check
              _
            $region66: #{tpu_custom_call.1} parent=59 // pred_check_branch
              %321 = sbr.rel target = $region68
            $region67: #{tpu_custom_call.1} parent=59 // pred_region
              %s323 = ssub.s32 256, 1
              loop: start=0, step=1, limit=1
              $region69: #{tpu_custom_call.1} parent=67 // loop_pre_header
                _
              $region70: #{tpu_custom_call.1} parent=67 // loop_header
                %s325 = sphi 0, %s329
                %p326 = scmp.ge.s32.totalorder %s325, 1
                %s330 = sphi %s315, %s315
                %s331 = sphi %s312, %s312
              $region71: #{tpu_custom_call.1} parent=67 // loop_header_branch
                %328 = sbr.rel (%p326) target = $region75
              $region72: #{tpu_custom_call.1} parent=67 // loop_body
                %v332 = vld [vmem:[%s330] sm:%s323]
                %333 = vst [vmem:[%s331] sm:%s323] %v332
                %v334 = vld [vmem:[%s330 + $0x10] sm:%s323]
                %335 = vst [vmem:[%s331 + $0x8] sm:%s323] %v334
                %v336 = vld [vmem:[%s330 + $0x20] sm:%s323]
                %337 = vst [vmem:[%s331 + $0x10] sm:%s323] %v336
                %v338 = vld [vmem:[%s330 + $0x30] sm:%s323]
                %339 = vst [vmem:[%s331 + $0x18] sm:%s323] %v338
                %v340 = vld [vmem:[%s330 + $0x40] sm:%s323]
                %341 = vst [vmem:[%s331 + $0x20] sm:%s323] %v340
                %v342 = vld [vmem:[%s330 + $0x50] sm:%s323]
                %343 = vst [vmem:[%s331 + $0x28] sm:%s323] %v342
                %v344 = vld [vmem:[%s330 + $0x60] sm:%s323]
                %345 = vst [vmem:[%s331 + $0x30] sm:%s323] %v344
                %v346 = vld [vmem:[%s330 + $0x70] sm:%s323]
                %347 = vst [vmem:[%s331 + $0x38] sm:%s323] %v346
              $region73: #{tpu_custom_call.1} parent=67 // loop_footer
                %s329 = sadd.s32 1, %s325
              $region74: #{tpu_custom_call.1} parent=67 // loop_footer_branch
                %324 = sbr.rel target = $region70
              $region75: #{tpu_custom_call.1} parent=67 // loop_exit
                _
            $region68: #{tpu_custom_call.1} parent=59 // pred_fallthru
              _
          $region60: #{tpu_custom_call.1} parent=55 // pred_fallthru
            _
          %376 = vnop
        $region56: #{tpu_custom_call.1} parent=51 // pred_fallthru
          _
      $region52: #{tpu_custom_call.1} parent=5 // pred_fallthru
        _
      %p377 = scmp.le.s32.totalorder 1, %s19
      %p378 = scmp.lt.s32.totalorder %s19, 3
      %p379 = pnand %p377, %p378
      %p380 = pneg %p379
      // Predicated region
      $region91: #{tpu_custom_call.1} parent=5 // pred_check
        _
      $region92: #{tpu_custom_call.1} parent=5 // pred_check_branch
        %382 = sbr.rel (%p379) target = $region94
      $region93: #{tpu_custom_call.1} parent=5 // pred_region
        %s383 = ssub.s32 %s19, 1
        %s384 = sand.u32 %s32, 1
        %s385 = sand.u32 %s32, 1
        %s386 = smul.addr %s385, 64
        %s387 = scalar_lea.vmem [#allocation3], %s386
        // Predicated region
        $region95: #{tpu_custom_call.1} parent=93 // pred_check
          %p388 = pneg %p45
        $region96: #{tpu_custom_call.1} parent=93 // pred_check_branch
          %390 = sbr.rel (%p388) target = $region98
        $region97: #{tpu_custom_call.1} parent=93 // pred_region
          _
        $region98: #{tpu_custom_call.1} parent=93 // pred_fallthru
          _
        %s391 = sand.u32 %s32, 1
        %s392 = sand.u32 %s32, 1
        %s393 = smul.addr %s392, 64
        %s394 = scalar_lea.vmem [#allocation3], %s393
        %p395 = pneg %p45
        %p396 = pneg %p42
        %p397 = pneg %p66
        %p398 = pneg %p63
        %p399 = pneg %p87
        %p400 = pneg %p84
        %p401 = pneg %p108
        %p402 = pneg %p105
        %p403 = pneg %p129
        %p404 = pneg %p126
        %p405 = pneg %p150
        %p406 = pneg %p147
        %p407 = pneg %p171
        %p408 = pneg %p168
        %p409 = pneg %p192
        %p410 = pneg %p189
        %p411 = pneg %p213
        %p412 = pneg %p210
        %p413 = pneg %p234
        %p414 = pneg %p231
        %p415 = pneg %p260
        %p416 = pneg %p257
        %s417 = sand.u32 %s247, 1
        %s418 = scalar_lea.sflag [#allocation5], %s417
        %s419 = sand.u32 %s247, 1
        %s420 = smul.addr %s419, 128
        %s421 = scalar_lea.vmem [#allocation4], %s420
        %s422 = smul.u32 2, %s24
        %s423 = smul.u32 2, %s24
        %v425 = vld [vmem:[%s387] sm:$0xff]
        %v426 = vld [vmem:[%s387 + $0x8] sm:$0xff]
        %v427 = vld [vmem:[%s387 + $0x10] sm:$0xff]
        %v428 = vld [vmem:[%s387 + $0x18] sm:$0xff]
        %v429 = vld [vmem:[%s387 + $0x20] sm:$0xff]
        %v430 = vld [vmem:[%s387 + $0x28] sm:$0xff]
        %v431 = vld [vmem:[%s387 + $0x30] sm:$0xff]
        %v432 = vld [vmem:[%s387 + $0x38] sm:$0x33]
        %v433 = vld [vmem:[%s1] sm:$0xff]
        %v434 = vld [vmem:[%s1 + $0x8] sm:$0xff]
        %v435 = vld [vmem:[%s2] sm:$0xf]
        %v436 = vld [vmem:[%s2 + $0x4] sm:$0xf]
        %v437 = vld [vmem:[%s2 + $0x8] sm:$0xf]
        %v438 = vld [vmem:[%s2 + $0xc] sm:$0xf]
        %v439 = vld [vmem:[%s2 + $0x10] sm:$0xf]
        %v440 = vld [vmem:[%s2 + $0x14] sm:$0xf]
        %v441 = vld [vmem:[%s2 + $0x18] sm:$0xf]
        %v442 = vld [vmem:[%s2 + $0x1c] sm:$0xf]
        %v443 = vld [vmem:[%s2 + $0x20] sm:$0xf]
        %v453 = vunpack.c.l.b16 %v435
        %v454 = vunpack.c.l.b16 %v436
        %v455 = vunpack.c.l.b16 %v437
        %v456 = vunpack.c.l.b16 %v438
        %v457 = vunpack.c.l.b16 %v439
        %v458 = vunpack.c.l.b16 %v440
        %v459 = vunpack.c.l.b16 %v441
        %v460 = vunpack.c.l.b16 %v442
        %v461 = vunpack.c.l.b16 %v443
        %v462 = vpack.c.b16 %v454, %v453
        %v463 = vpack.c.b16 %v456, %v455
        %v464 = vpack.c.b16 %v458, %v457
        %v465 = vpack.c.b16 %v460, %v459
        %v466 = vpack.c.b16 %v461, %v461
        %v475 = vunpack.c.l.b16 %v425
        %v476 = vunpack.c.h.b16 %v425
        %v477 = vunpack.c.l.b16 %v426
        %v478 = vunpack.c.h.b16 %v426
        %v479 = vunpack.c.l.b16 %v427
        %v480 = vunpack.c.h.b16 %v427
        %v481 = vunpack.c.l.b16 %v428
        %v482 = vunpack.c.h.b16 %v428
        %v483 = vunpack.c.l.b16 %v429
        %v484 = vunpack.c.h.b16 %v429
        %v485 = vunpack.c.l.b16 %v430
        %v486 = vunpack.c.h.b16 %v430
        %v487 = vunpack.c.l.b16 %v431
        %v488 = vunpack.c.h.b16 %v431
        %v489 = vunpack.c.l.b16 %v432
        %v490 = vunpack.c.h.b16 %v432
        %v491 = vpack.c.b16 %v477, %v475
        %v492 = vpack.c.b16 %v478, %v476
        %v493 = vpack.c.b16 %v481, %v479
        %v494 = vpack.c.b16 %v482, %v480
        %v495 = vpack.c.b16 %v485, %v483
        %v496 = vpack.c.b16 %v486, %v484
        %v497 = vpack.c.b16 %v489, %v487
        %v498 = vpack.c.b16 %v490, %v488
        %vm505 = vcmask 490496
        %v507 = vsel %vm505, %v462, 0
        %v510 = vsel %vm505, %v463, 0
        %v513 = vsel %vm505, %v464, 0
        %v516 = vsel %vm505, %v465, 0
        %v519 = vsel %vm505, %v466, 0
        %vm521 = vcmask 1045504
        %v523 = vsel %vm521, %v497, 0
        %v526 = vsel %vm521, %v498, 0
        %528 = vmatprep.subr.bf16.mxu0 0
        %529 = vmatpush1.bf16.msra.mxu0 0
        %530 = vmatprep.subr.bf16.mxu0 0
        %531 = vmatpush1.bf16.msra.mxu0 0
        %532 = vmatprep.subr.bf16.mxu0 0
        %533 = vmatpush1.bf16.msra.mxu0 0
        %534 = vmatprep.subr.bf16.mxu0 0
        %535 = vmatpush1.bf16.msra.mxu0 0
        %536 = vmatprep.subr.bf16.mxu0 %v526
        %537 = vmatpush1.bf16.msra.mxu0 %v523
        %538 = vmatprep.subr.bf16.mxu0 %v496
        %539 = vmatpush1.bf16.msra.mxu0 %v495
        %540 = vmatprep.subr.bf16.mxu0 %v494
        %541 = vmatpush1.bf16.msra.mxu0 %v493
        %542 = vmatprep.subr.bf16.mxu0 %v492
        %543 = vmatpush1.bf16.msra.mxu0 %v491
        %544 = vmatprep.subr.bf16.mxu0 0
        %545 = vmatpush2.bf16.msra.mxu0 0
        %546 = vmatprep.subr.bf16.mxu0 0
        %547 = vmatpush2.bf16.msra.mxu0 0
        %548 = vmatprep.subr.bf16.mxu0 0
        %549 = vmatpush2.bf16.msra.mxu0 0
        %550 = vmatprep.subr.bf16.mxu0 0
        %551 = vmatpush2.bf16.msra.mxu0 0
        %552 = vmatprep.subr.bf16.mxu0 0
        %553 = vmatpush2.bf16.msra.mxu0 0
        %554 = vmatprep.subr.bf16.mxu0 0
        %555 = vmatpush2.bf16.msra.mxu0 0
        %556 = vmatprep.subr.bf16.mxu0 0
        %557 = vmatpush2.bf16.msra.mxu0 0
        %558 = vmatprep.subr.bf16.mxu0 0
        %559 = vmatpush2.bf16.msra.mxu0 0
        %560 = vmatprep.mubr.bf16.mxu0 0
        %561 = vmatmul.mubr.bf16.gmra.mxu0 %v507
        %v562 = vpop.f32.mrf.mxu0
        %v563 = vadd.f32 0.0, %v562
        %v564 = vpop.f32.mrf.mxu0
        %v565 = vadd.f32 0.0, %v564
        %v566 = vpop.f32.mrf.mxu0
        %v567 = vadd.f32 0.0, %v566
        %v568 = vpop.f32.mrf.mxu0
        %v569 = vadd.f32 0.0, %v568
        %570 = vmatprep.mubr.bf16.mxu0 0
        %571 = vmatmul.mubr.bf16.gmra.mxu0 %v510
        %v572 = vpop.f32.mrf.mxu0
        %v573 = vadd.f32 0.0, %v572
        %v574 = vpop.f32.mrf.mxu0
        %v575 = vadd.f32 0.0, %v574
        %v576 = vpop.f32.mrf.mxu0
        %v577 = vadd.f32 0.0, %v576
        %v578 = vpop.f32.mrf.mxu0
        %v579 = vadd.f32 0.0, %v578
        %580 = vmatprep.mubr.bf16.mxu0 0
        %581 = vmatmul.mubr.bf16.gmra.mxu0 %v513
        %v582 = vpop.f32.mrf.mxu0
        %v583 = vadd.f32 0.0, %v582
        %v584 = vpop.f32.mrf.mxu0
        %v585 = vadd.f32 0.0, %v584
        %v586 = vpop.f32.mrf.mxu0
        %v587 = vadd.f32 0.0, %v586
        %v588 = vpop.f32.mrf.mxu0
        %v589 = vadd.f32 0.0, %v588
        %590 = vmatprep.mubr.bf16.mxu0 0
        %591 = vmatmul.mubr.bf16.gmra.mxu0 %v516
        %v592 = vpop.f32.mrf.mxu0
        %v593 = vadd.f32 0.0, %v592
        %v594 = vpop.f32.mrf.mxu0
        %v595 = vadd.f32 0.0, %v594
        %v596 = vpop.f32.mrf.mxu0
        %v597 = vadd.f32 0.0, %v596
        %v598 = vpop.f32.mrf.mxu0
        %v599 = vadd.f32 0.0, %v598
        %600 = vmatprep.mubr.bf16.mxu0 0
        %601 = vmatmul.mubr.bf16.gmra.mxu0 %v519
        %v602 = vpop.f32.mrf.mxu0
        %v603 = vadd.f32 0.0, %v602
        %v604 = vpop.f32.mrf.mxu0
        %v605 = vadd.f32 0.0, %v604
        %v606 = vpop.f32.mrf.mxu0
        %v607 = vpop.f32.mrf.mxu0
        %608 = vdwg.mxu0
        %609 = vrot.lane.b32.xlu0 %v563, 17
        %v610 = vpop.permute.xlu0 %609
        %611 = vrot.lane.b32.xlu0 %v567, 17
        %v612 = vpop.permute.xlu0 %611
        %613 = vrot.lane.b32.xlu0 %v573, 17
        %v614 = vpop.permute.xlu0 %613
        %615 = vrot.lane.b32.xlu0 %v565, 17
        %v616 = vpop.permute.xlu0 %615
        %617 = vrot.lane.b32.xlu0 %v569, 17
        %v618 = vpop.permute.xlu0 %617
        %619 = vrot.lane.b32.xlu0 %v575, 17
        %v620 = vpop.permute.xlu0 %619
        %v621 = vlaneseq
        %v622 = vand.u32 %v621, 127
        %vm623 = vcmp.lt.s32.totalorder %v622, 17
        %v624 = vsel %vm623, %v610, %v616
        %v625 = vsel %vm623, %v612, %v618
        %v626 = vsel %vm623, %v614, %v620
        %v627 = vsel %vm623, %v616, %v610
        %v628 = vsel %vm623, %v618, %v612
        %v629 = vsel %vm623, %v620, %v614
        %v630 = vlaneseq
        %v631 = vshrl.u32 %v630, 7
        %v632 = vsub.s32 0, %v631
        %v633 = vrot.slane %v433, %v632
        %v634 = vlaneseq
        %v635 = vshrl.u32 %v634, 7
        %v636 = vsub.s32 0, %v635
        %v637 = vrot.slane %v434, %v636
        %v638 = vmul.f32 %v627, %v633
        %v639 = vmul.f32 %v624, %v637
        %v640 = vmul.f32 %v628, %v633
        %v641 = vmul.f32 %v625, %v637
        %v642 = vmul.f32 %v629, %v633
        %v643 = vmul.f32 %v626, %v637
        %v644 = vadd.f32 %v638, 0.0
        %v645 = vadd.f32 %v639, 0.0
        %v646 = vadd.f32 %v640, 0.0
        %v647 = vadd.f32 %v641, 0.0
        %v648 = vadd.f32 %v642, 0.0
        %v649 = vadd.f32 %v643, 0.0
        %650 = vrot.lane.b32.xlu0 %v577, 16
        %v651 = vpop.permute.xlu0 %650
        %652 = vrot.lane.b32.xlu0 %v583, 16
        %v653 = vpop.permute.xlu0 %652
        %654 = vrot.lane.b32.xlu0 %v587, 16
        %v655 = vpop.permute.xlu0 %654
        %656 = vrot.lane.b32.xlu0 %v579, 16
        %v657 = vpop.permute.xlu0 %656
        %658 = vrot.lane.b32.xlu0 %v585, 16
        %v659 = vpop.permute.xlu0 %658
        %660 = vrot.lane.b32.xlu0 %v589, 16
        %v661 = vpop.permute.xlu0 %660
        %vm662 = vcmp.lt.s32.totalorder %v622, 16
        %v663 = vsel %vm662, %v651, %v657
        %v664 = vsel %vm662, %v653, %v659
        %v665 = vsel %vm662, %v655, %v661
        %v666 = vsel %vm662, %v657, %v651
        %v667 = vsel %vm662, %v659, %v653
        %v668 = vsel %vm662, %v661, %v655
        %v669 = vlaneseq
        %v670 = vshrl.u32 %v669, 7
        %v671 = vsub.s32 1, %v670
        %v672 = vrot.slane %v433, %v671
        %v673 = vlaneseq
        %v674 = vshrl.u32 %v673, 7
        %v675 = vsub.s32 1, %v674
        %v676 = vrot.slane %v434, %v675
        %v677 = vmul.f32 %v666, %v672
        %v678 = vmul.f32 %v663, %v676
        %v679 = vmul.f32 %v667, %v672
        %v680 = vmul.f32 %v664, %v676
        %v681 = vmul.f32 %v668, %v672
        %v682 = vmul.f32 %v665, %v676
        %v683 = vadd.f32 %v644, %v677
        %v684 = vadd.f32 %v645, %v678
        %v685 = vadd.f32 %v646, %v679
        %v686 = vadd.f32 %v647, %v680
        %v687 = vadd.f32 %v648, %v681
        %v688 = vadd.f32 %v649, %v682
        %689 = vrot.lane.b32.xlu0 %v593, 15
        %v690 = vpop.permute.xlu0 %689
        %691 = vrot.lane.b32.xlu0 %v597, 15
        %v692 = vpop.permute.xlu0 %691
        %693 = vrot.lane.b32.xlu0 %v603, 15
        %v694 = vpop.permute.xlu0 %693
        %695 = vrot.lane.b32.xlu0 %v595, 15
        %v696 = vpop.permute.xlu0 %695
        %697 = vrot.lane.b32.xlu0 %v599, 15
        %v698 = vpop.permute.xlu0 %697
        %699 = vrot.lane.b32.xlu0 %v605, 15
        %v700 = vpop.permute.xlu0 %699
        %vm701 = vcmp.lt.s32.totalorder %v622, 15
        %v702 = vsel %vm701, %v690, %v696
        %v703 = vsel %vm701, %v692, %v698
        %v704 = vsel %vm701, %v694, %v700
        %v705 = vsel %vm701, %v696, %v690
        %v706 = vsel %vm701, %v698, %v692
        %v707 = vsel %vm701, %v700, %v694
        %v708 = vlaneseq
        %v709 = vshrl.u32 %v708, 7
        %v710 = vsub.s32 2, %v709
        %v711 = vrot.slane %v433, %v710
        %v712 = vlaneseq
        %v713 = vshrl.u32 %v712, 7
        %v714 = vsub.s32 2, %v713
        %v715 = vrot.slane %v434, %v714
        %v716 = vmul.f32 %v705, %v711
        %v717 = vmul.f32 %v702, %v715
        %v718 = vmul.f32 %v706, %v711
        %v719 = vmul.f32 %v703, %v715
        %v720 = vmul.f32 %v707, %v711
        %v721 = vmul.f32 %v704, %v715
        %v722 = vadd.f32 %v683, %v716
        %v723 = vadd.f32 %v684, %v717
        %v724 = vadd.f32 %v685, %v718
        %v725 = vadd.f32 %v686, %v719
        %v726 = vadd.f32 %v687, %v720
        %v727 = vadd.f32 %v688, %v721
        %s728 = scalar_lea.vmem %s2, 36
        %v729 = vld [vmem:[%s728] sm:$0xf]
        %v730 = vld [vmem:[%s728 + $0x4] sm:$0xf]
        %v731 = vld [vmem:[%s728 + $0x8] sm:$0xf]
        %v732 = vld [vmem:[%s728 + $0xc] sm:$0xf]
        %v733 = vld [vmem:[%s728 + $0x10] sm:$0xf]
        %v734 = vld [vmem:[%s728 + $0x14] sm:$0xf]
        %v735 = vld [vmem:[%s728 + $0x18] sm:$0xf]
        %v736 = vld [vmem:[%s728 + $0x1c] sm:$0xf]
        %v737 = vld [vmem:[%s728 + $0x20] sm:$0xf]
        %v747 = vunpack.c.l.b16 %v729
        %v748 = vunpack.c.l.b16 %v730
        %v749 = vunpack.c.l.b16 %v731
        %v750 = vunpack.c.l.b16 %v732
        %v751 = vunpack.c.l.b16 %v733
        %v752 = vunpack.c.l.b16 %v734
        %v753 = vunpack.c.l.b16 %v735
        %v754 = vunpack.c.l.b16 %v736
        %v755 = vunpack.c.l.b16 %v737
        %v756 = vpack.c.b16 %v748, %v747
        %v757 = vpack.c.b16 %v750, %v749
        %v758 = vpack.c.b16 %v752, %v751
        %v759 = vpack.c.b16 %v754, %v753
        %v760 = vpack.c.b16 %v755, %v755
        %v762 = vsel %vm505, %v756, 0
        %v765 = vsel %vm505, %v757, 0
        %v768 = vsel %vm505, %v758, 0
        %v771 = vsel %vm505, %v759, 0
        %v774 = vsel %vm505, %v760, 0
        %776 = vmatprep.subr.bf16.mxu0 0
        %777 = vmatpush1.bf16.msra.mxu0 0
        %778 = vmatprep.subr.bf16.mxu0 0
        %779 = vmatpush1.bf16.msra.mxu0 0
        %780 = vmatprep.subr.bf16.mxu0 0
        %781 = vmatpush1.bf16.msra.mxu0 0
        %782 = vmatprep.subr.bf16.mxu0 0
        %783 = vmatpush1.bf16.msra.mxu0 0
        %784 = vmatprep.subr.bf16.mxu0 %v526
        %785 = vmatpush1.bf16.msra.mxu0 %v523
        %786 = vmatprep.subr.bf16.mxu0 %v496
        %787 = vmatpush1.bf16.msra.mxu0 %v495
        %788 = vmatprep.subr.bf16.mxu0 %v494
        %789 = vmatpush1.bf16.msra.mxu0 %v493
        %790 = vmatprep.subr.bf16.mxu0 %v492
        %791 = vmatpush1.bf16.msra.mxu0 %v491
        %792 = vmatprep.subr.bf16.mxu0 0
        %793 = vmatpush2.bf16.msra.mxu0 0
        %794 = vmatprep.subr.bf16.mxu0 0
        %795 = vmatpush2.bf16.msra.mxu0 0
        %796 = vmatprep.subr.bf16.mxu0 0
        %797 = vmatpush2.bf16.msra.mxu0 0
        %798 = vmatprep.subr.bf16.mxu0 0
        %799 = vmatpush2.bf16.msra.mxu0 0
        %800 = vmatprep.subr.bf16.mxu0 0
        %801 = vmatpush2.bf16.msra.mxu0 0
        %802 = vmatprep.subr.bf16.mxu0 0
        %803 = vmatpush2.bf16.msra.mxu0 0
        %804 = vmatprep.subr.bf16.mxu0 0
        %805 = vmatpush2.bf16.msra.mxu0 0
        %806 = vmatprep.subr.bf16.mxu0 0
        %807 = vmatpush2.bf16.msra.mxu0 0
        %808 = vmatprep.mubr.bf16.mxu0 0
        %809 = vmatmul.mubr.bf16.gmra.mxu0 %v762
        %v810 = vpop.f32.mrf.mxu0
        %v811 = vadd.f32 0.0, %v810
        %v812 = vpop.f32.mrf.mxu0
        %v813 = vadd.f32 0.0, %v812
        %v814 = vpop.f32.mrf.mxu0
        %v815 = vadd.f32 0.0, %v814
        %v816 = vpop.f32.mrf.mxu0
        %v817 = vadd.f32 0.0, %v816
        %818 = vmatprep.mubr.bf16.mxu0 0
        %819 = vmatmul.mubr.bf16.gmra.mxu0 %v765
        %v820 = vpop.f32.mrf.mxu0
        %v821 = vadd.f32 0.0, %v820
        %v822 = vpop.f32.mrf.mxu0
        %v823 = vadd.f32 0.0, %v822
        %v824 = vpop.f32.mrf.mxu0
        %v825 = vadd.f32 0.0, %v824
        %v826 = vpop.f32.mrf.mxu0
        %v827 = vadd.f32 0.0, %v826
        %828 = vmatprep.mubr.bf16.mxu0 0
        %829 = vmatmul.mubr.bf16.gmra.mxu0 %v768
        %v830 = vpop.f32.mrf.mxu0
        %v831 = vadd.f32 0.0, %v830
        %v832 = vpop.f32.mrf.mxu0
        %v833 = vadd.f32 0.0, %v832
        %v834 = vpop.f32.mrf.mxu0
        %v835 = vadd.f32 0.0, %v834
        %v836 = vpop.f32.mrf.mxu0
        %v837 = vadd.f32 0.0, %v836
        %838 = vmatprep.mubr.bf16.mxu0 0
        %839 = vmatmul.mubr.bf16.gmra.mxu0 %v771
        %v840 = vpop.f32.mrf.mxu0
        %v841 = vadd.f32 0.0, %v840
        %v842 = vpop.f32.mrf.mxu0
        %v843 = vadd.f32 0.0, %v842
        %v844 = vpop.f32.mrf.mxu0
        %v845 = vadd.f32 0.0, %v844
        %v846 = vpop.f32.mrf.mxu0
        %v847 = vadd.f32 0.0, %v846
        %848 = vmatprep.mubr.bf16.mxu0 0
        %849 = vmatmul.mubr.bf16.gmra.mxu0 %v774
        %v850 = vpop.f32.mrf.mxu0
        %v851 = vadd.f32 0.0, %v850
        %v852 = vpop.f32.mrf.mxu0
        %v853 = vadd.f32 0.0, %v852
        %v854 = vpop.f32.mrf.mxu0
        %v855 = vpop.f32.mrf.mxu0
        %856 = vdwg.mxu0
        %857 = vrot.lane.b32.xlu0 %v811, 1
        %v858 = vpop.permute.xlu0 %857
        %859 = vrot.lane.b32.xlu0 %v815, 1
        %v860 = vpop.permute.xlu0 %859
        %861 = vrot.lane.b32.xlu0 %v821, 1
        %v862 = vpop.permute.xlu0 %861
        %863 = vrot.lane.b32.xlu0 %v813, 1
        %v864 = vpop.permute.xlu0 %863
        %865 = vrot.lane.b32.xlu0 %v817, 1
        %v866 = vpop.permute.xlu0 %865
        %867 = vrot.lane.b32.xlu0 %v823, 1
        %v868 = vpop.permute.xlu0 %867
        %vm869 = vcmp.lt.s32.totalorder %v622, 1
        %v870 = vsel %vm869, %v858, %v864
        %v871 = vsel %vm869, %v860, %v866
        %v872 = vsel %vm869, %v862, %v868
        %v873 = vsel %vm869, %v864, %v858
        %v874 = vsel %vm869, %v866, %v860
        %v875 = vsel %vm869, %v868, %v862
        %v876 = vlaneseq
        %v877 = vshrl.u32 %v876, 7
        %v878 = vsub.s32 3, %v877
        %v879 = vrot.slane %v433, %v878
        %v880 = vlaneseq
        %v881 = vshrl.u32 %v880, 7
        %v882 = vsub.s32 3, %v881
        %v883 = vrot.slane %v434, %v882
        %v884 = vmul.f32 %v873, %v879
        %v885 = vmul.f32 %v870, %v883
        %v886 = vmul.f32 %v874, %v879
        %v887 = vmul.f32 %v871, %v883
        %v888 = vmul.f32 %v875, %v879
        %v889 = vmul.f32 %v872, %v883
        %v890 = vadd.f32 %v722, %v884
        %v891 = vadd.f32 %v723, %v885
        %v892 = vadd.f32 %v724, %v886
        %v893 = vadd.f32 %v725, %v887
        %v894 = vadd.f32 %v726, %v888
        %v895 = vadd.f32 %v727, %v889
        %v896 = vadd.f32 %v890, %v825
        %v897 = vadd.f32 %v891, %v827
        %v898 = vadd.f32 %v892, %v831
        %v899 = vadd.f32 %v893, %v833
        %v900 = vadd.f32 %v894, %v835
        %v901 = vadd.f32 %v895, %v837
        %902 = vrot.lane.b32.xlu0 %v841, 127
        %v903 = vpop.permute.xlu0 %902
        %904 = vrot.lane.b32.xlu0 %v845, 127
        %v905 = vpop.permute.xlu0 %904
        %906 = vrot.lane.b32.xlu0 %v851, 127
        %v907 = vpop.permute.xlu0 %906
        %908 = vrot.lane.b32.xlu0 %v843, 127
        %v909 = vpop.permute.xlu0 %908
        %910 = vrot.lane.b32.xlu0 %v847, 127
        %v911 = vpop.permute.xlu0 %910
        %912 = vrot.lane.b32.xlu0 %v853, 127
        %v913 = vpop.permute.xlu0 %912
        %vm914 = vcmp.lt.s32.totalorder %v622, 127
        %v915 = vsel %vm914, %v903, %v909
        %v916 = vsel %vm914, %v905, %v911
        %v917 = vsel %vm914, %v907, %v913
        %v918 = vsel %vm914, %v909, %v903
        %v919 = vsel %vm914, %v911, %v905
        %v920 = vsel %vm914, %v913, %v907
        %v921 = vlaneseq
        %v922 = vshrl.u32 %v921, 7
        %v923 = vsub.s32 4, %v922
        %v924 = vrot.slane %v433, %v923
        %v925 = vlaneseq
        %v926 = vshrl.u32 %v925, 7
        %v927 = vsub.s32 4, %v926
        %v928 = vrot.slane %v434, %v927
        %v929 = vmul.f32 %v915, %v924
        %v930 = vmul.f32 %v918, %v928
        %v931 = vmul.f32 %v916, %v924
        %v932 = vmul.f32 %v919, %v928
        %v933 = vmul.f32 %v917, %v924
        %v934 = vmul.f32 %v920, %v928
        %v935 = vadd.f32 %v896, %v929
        %v936 = vadd.f32 %v897, %v930
        %v937 = vadd.f32 %v898, %v931
        %v938 = vadd.f32 %v899, %v932
        %v939 = vadd.f32 %v900, %v933
        %v940 = vadd.f32 %v901, %v934
        %s941 = scalar_lea.vmem %s2, 72
        %v942 = vld [vmem:[%s941] sm:$0xf]
        %v943 = vld [vmem:[%s941 + $0x4] sm:$0xf]
        %v944 = vld [vmem:[%s941 + $0x8] sm:$0xf]
        %v945 = vld [vmem:[%s941 + $0xc] sm:$0xf]
        %v946 = vld [vmem:[%s941 + $0x10] sm:$0xf]
        %v947 = vld [vmem:[%s941 + $0x14] sm:$0xf]
        %v948 = vld [vmem:[%s941 + $0x18] sm:$0xf]
        %v949 = vld [vmem:[%s941 + $0x1c] sm:$0xf]
        %v950 = vld [vmem:[%s941 + $0x20] sm:$0xf]
        %v960 = vunpack.c.l.b16 %v942
        %v961 = vunpack.c.l.b16 %v943
        %v962 = vunpack.c.l.b16 %v944
        %v963 = vunpack.c.l.b16 %v945
        %v964 = vunpack.c.l.b16 %v946
        %v965 = vunpack.c.l.b16 %v947
        %v966 = vunpack.c.l.b16 %v948
        %v967 = vunpack.c.l.b16 %v949
        %v968 = vunpack.c.l.b16 %v950
        %v969 = vpack.c.b16 %v961, %v960
        %v970 = vpack.c.b16 %v963, %v962
        %v971 = vpack.c.b16 %v965, %v964
        %v972 = vpack.c.b16 %v967, %v966
        %v973 = vpack.c.b16 %v968, %v968
        %v975 = vsel %vm505, %v969, 0
        %v978 = vsel %vm505, %v970, 0
        %v981 = vsel %vm505, %v971, 0
        %v984 = vsel %vm505, %v972, 0
        %v987 = vsel %vm505, %v973, 0
        %989 = vmatprep.subr.bf16.mxu0 0
        %990 = vmatpush1.bf16.msra.mxu0 0
        %991 = vmatprep.subr.bf16.mxu0 0
        %992 = vmatpush1.bf16.msra.mxu0 0
        %993 = vmatprep.subr.bf16.mxu0 0
        %994 = vmatpush1.bf16.msra.mxu0 0
        %995 = vmatprep.subr.bf16.mxu0 0
        %996 = vmatpush1.bf16.msra.mxu0 0
        %997 = vmatprep.subr.bf16.mxu0 %v526
        %998 = vmatpush1.bf16.msra.mxu0 %v523
        %999 = vmatprep.subr.bf16.mxu0 %v496
        %1000 = vmatpush1.bf16.msra.mxu0 %v495
        %1001 = vmatprep.subr.bf16.mxu0 %v494
        %1002 = vmatpush1.bf16.msra.mxu0 %v493
        %1003 = vmatprep.subr.bf16.mxu0 %v492
        %1004 = vmatpush1.bf16.msra.mxu0 %v491
        %1005 = vmatprep.subr.bf16.mxu0 0
        %1006 = vmatpush2.bf16.msra.mxu0 0
        %1007 = vmatprep.subr.bf16.mxu0 0
        %1008 = vmatpush2.bf16.msra.mxu0 0
        %1009 = vmatprep.subr.bf16.mxu0 0
        %1010 = vmatpush2.bf16.msra.mxu0 0
        %1011 = vmatprep.subr.bf16.mxu0 0
        %1012 = vmatpush2.bf16.msra.mxu0 0
        %1013 = vmatprep.subr.bf16.mxu0 0
        %1014 = vmatpush2.bf16.msra.mxu0 0
        %1015 = vmatprep.subr.bf16.mxu0 0
        %1016 = vmatpush2.bf16.msra.mxu0 0
        %1017 = vmatprep.subr.bf16.mxu0 0
        %1018 = vmatpush2.bf16.msra.mxu0 0
        %1019 = vmatprep.subr.bf16.mxu0 0
        %1020 = vmatpush2.bf16.msra.mxu0 0
        %1021 = vmatprep.mubr.bf16.mxu0 0
        %1022 = vmatmul.mubr.bf16.gmra.mxu0 %v975
        %v1023 = vpop.f32.mrf.mxu0
        %v1024 = vadd.f32 0.0, %v1023
        %v1025 = vpop.f32.mrf.mxu0
        %v1026 = vadd.f32 0.0, %v1025
        %v1027 = vpop.f32.mrf.mxu0
        %v1028 = vadd.f32 0.0, %v1027
        %v1029 = vpop.f32.mrf.mxu0
        %v1030 = vadd.f32 0.0, %v1029
        %1031 = vmatprep.mubr.bf16.mxu0 0
        %1032 = vmatmul.mubr.bf16.gmra.mxu0 %v978
        %v1033 = vpop.f32.mrf.mxu0
        %v1034 = vadd.f32 0.0, %v1033
        %v1035 = vpop.f32.mrf.mxu0
        %v1036 = vadd.f32 0.0, %v1035
        %v1037 = vpop.f32.mrf.mxu0
        %v1038 = vadd.f32 0.0, %v1037
        %v1039 = vpop.f32.mrf.mxu0
        %v1040 = vadd.f32 0.0, %v1039
        %1041 = vmatprep.mubr.bf16.mxu0 0
        %1042 = vmatmul.mubr.bf16.gmra.mxu0 %v981
        %v1043 = vpop.f32.mrf.mxu0
        %v1044 = vadd.f32 0.0, %v1043
        %v1045 = vpop.f32.mrf.mxu0
        %v1046 = vadd.f32 0.0, %v1045
        %v1047 = vpop.f32.mrf.mxu0
        %v1048 = vadd.f32 0.0, %v1047
        %v1049 = vpop.f32.mrf.mxu0
        %v1050 = vadd.f32 0.0, %v1049
        %1051 = vmatprep.mubr.bf16.mxu0 0
        %1052 = vmatmul.mubr.bf16.gmra.mxu0 %v984
        %v1053 = vpop.f32.mrf.mxu0
        %v1054 = vadd.f32 0.0, %v1053
        %v1055 = vpop.f32.mrf.mxu0
        %v1056 = vadd.f32 0.0, %v1055
        %v1057 = vpop.f32.mrf.mxu0
        %v1058 = vadd.f32 0.0, %v1057
        %v1059 = vpop.f32.mrf.mxu0
        %v1060 = vadd.f32 0.0, %v1059
        %1061 = vmatprep.mubr.bf16.mxu0 0
        %1062 = vmatmul.mubr.bf16.gmra.mxu0 %v987
        %v1063 = vpop.f32.mrf.mxu0
        %v1064 = vadd.f32 0.0, %v1063
        %v1065 = vpop.f32.mrf.mxu0
        %v1066 = vadd.f32 0.0, %v1065
        %v1067 = vpop.f32.mrf.mxu0
        %v1068 = vpop.f32.mrf.mxu0
        %1069 = vdwg.mxu0
        %1070 = vrot.lane.b32.xlu0 %v1024, 113
        %v1071 = vpop.permute.xlu0 %1070
        %1072 = vrot.lane.b32.xlu0 %v1028, 113
        %v1073 = vpop.permute.xlu0 %1072
        %1074 = vrot.lane.b32.xlu0 %v1034, 113
        %v1075 = vpop.permute.xlu0 %1074
        %1076 = vrot.lane.b32.xlu0 %v1026, 113
        %v1077 = vpop.permute.xlu0 %1076
        %1078 = vrot.lane.b32.xlu0 %v1030, 113
        %v1079 = vpop.permute.xlu0 %1078
        %1080 = vrot.lane.b32.xlu0 %v1036, 113
        %v1081 = vpop.permute.xlu0 %1080
        %vm1082 = vcmp.lt.s32.totalorder %v622, 113
        %v1083 = vsel %vm1082, %v1071, %v1077
        %v1084 = vsel %vm1082, %v1073, %v1079
        %v1085 = vsel %vm1082, %v1075, %v1081
        %v1086 = vsel %vm1082, %v1077, %v1071
        %v1087 = vsel %vm1082, %v1079, %v1073
        %v1088 = vsel %vm1082, %v1081, %v1075
        %v1089 = vlaneseq
        %v1090 = vshrl.u32 %v1089, 7
        %v1091 = vsub.s32 5, %v1090
        %v1092 = vrot.slane %v433, %v1091
        %v1093 = vlaneseq
        %v1094 = vshrl.u32 %v1093, 7
        %v1095 = vsub.s32 5, %v1094
        %v1096 = vrot.slane %v434, %v1095
        %v1097 = vmul.f32 %v1083, %v1092
        %v1098 = vmul.f32 %v1086, %v1096
        %v1099 = vmul.f32 %v1084, %v1092
        %v1100 = vmul.f32 %v1087, %v1096
        %v1101 = vmul.f32 %v1085, %v1092
        %v1102 = vmul.f32 %v1088, %v1096
        %v1103 = vadd.f32 %v935, %v1097
        %v1104 = vadd.f32 %v936, %v1098
        %v1105 = vadd.f32 %v937, %v1099
        %v1106 = vadd.f32 %v938, %v1100
        %v1107 = vadd.f32 %v939, %v1101
        %v1108 = vadd.f32 %v940, %v1102
        %1109 = vrot.lane.b32.xlu0 %v1038, 112
        %v1110 = vpop.permute.xlu0 %1109
        %1111 = vrot.lane.b32.xlu0 %v1044, 112
        %v1112 = vpop.permute.xlu0 %1111
        %1113 = vrot.lane.b32.xlu0 %v1048, 112
        %v1114 = vpop.permute.xlu0 %1113
        %1115 = vrot.lane.b32.xlu0 %v1040, 112
        %v1116 = vpop.permute.xlu0 %1115
        %1117 = vrot.lane.b32.xlu0 %v1046, 112
        %v1118 = vpop.permute.xlu0 %1117
        %1119 = vrot.lane.b32.xlu0 %v1050, 112
        %v1120 = vpop.permute.xlu0 %1119
        %vm1121 = vcmp.lt.s32.totalorder %v622, 112
        %v1122 = vsel %vm1121, %v1110, %v1116
        %v1123 = vsel %vm1121, %v1112, %v1118
        %v1124 = vsel %vm1121, %v1114, %v1120
        %v1125 = vsel %vm1121, %v1116, %v1110
        %v1126 = vsel %vm1121, %v1118, %v1112
        %v1127 = vsel %vm1121, %v1120, %v1114
        %v1128 = vlaneseq
        %v1129 = vshrl.u32 %v1128, 7
        %v1130 = vsub.s32 6, %v1129
        %v1131 = vrot.slane %v433, %v1130
        %v1132 = vlaneseq
        %v1133 = vshrl.u32 %v1132, 7
        %v1134 = vsub.s32 6, %v1133
        %v1135 = vrot.slane %v434, %v1134
        %v1136 = vmul.f32 %v1122, %v1131
        %v1137 = vmul.f32 %v1125, %v1135
        %v1138 = vmul.f32 %v1123, %v1131
        %v1139 = vmul.f32 %v1126, %v1135
        %v1140 = vmul.f32 %v1124, %v1131
        %v1141 = vmul.f32 %v1127, %v1135
        %v1142 = vadd.f32 %v1103, %v1136
        %v1143 = vadd.f32 %v1104, %v1137
        %v1144 = vadd.f32 %v1105, %v1138
        %v1145 = vadd.f32 %v1106, %v1139
        %v1146 = vadd.f32 %v1107, %v1140
        %v1147 = vadd.f32 %v1108, %v1141
        %1148 = vrot.lane.b32.xlu0 %v1054, 111
        %v1149 = vpop.permute.xlu0 %1148
        %1150 = vrot.lane.b32.xlu0 %v1058, 111
        %v1151 = vpop.permute.xlu0 %1150
        %1152 = vrot.lane.b32.xlu0 %v1064, 111
        %v1153 = vpop.permute.xlu0 %1152
        %1154 = vrot.lane.b32.xlu0 %v1056, 111
        %v1155 = vpop.permute.xlu0 %1154
        %1156 = vrot.lane.b32.xlu0 %v1060, 111
        %v1157 = vpop.permute.xlu0 %1156
        %1158 = vrot.lane.b32.xlu0 %v1066, 111
        %v1159 = vpop.permute.xlu0 %1158
        %vm1160 = vcmp.lt.s32.totalorder %v622, 111
        %v1161 = vsel %vm1160, %v1149, %v1155
        %v1162 = vsel %vm1160, %v1151, %v1157
        %v1163 = vsel %vm1160, %v1153, %v1159
        %v1164 = vsel %vm1160, %v1155, %v1149
        %v1165 = vsel %vm1160, %v1157, %v1151
        %v1166 = vsel %vm1160, %v1159, %v1153
        %v1167 = vlaneseq
        %v1168 = vshrl.u32 %v1167, 7
        %v1169 = vsub.s32 7, %v1168
        %v1170 = vrot.slane %v433, %v1169
        %v1171 = vlaneseq
        %v1172 = vshrl.u32 %v1171, 7
        %v1173 = vsub.s32 7, %v1172
        %v1174 = vrot.slane %v434, %v1173
        %v1175 = vmul.f32 %v1161, %v1170
        %v1176 = vmul.f32 %v1164, %v1174
        %v1177 = vmul.f32 %v1162, %v1170
        %v1178 = vmul.f32 %v1165, %v1174
        %v1179 = vmul.f32 %v1163, %v1170
        %v1180 = vmul.f32 %v1166, %v1174
        %v1181 = vadd.f32 %v1142, %v1175
        %v1182 = vadd.f32 %v1143, %v1176
        %v1183 = vadd.f32 %v1144, %v1177
        %v1184 = vadd.f32 %v1145, %v1178
        %v1185 = vadd.f32 %v1146, %v1179
        %v1186 = vadd.f32 %v1147, %v1180
        %v1187 = vld [vmem:[%s3] sm:$0xff]
        %v1188 = vld [vmem:[%s3 + $0x8] sm:$0xff]
        %v1189 = vld [vmem:[%s3 + $0x10] sm:$0xff]
        %1191 = vset.pattern.permute.xlu0 0
        %1192 = vperm.xlu0 %1191, %v1187
        %v1193 = vpop.permute.xlu0 %1192
        %1196 = vset.pattern.permute.xlu0 0
        %1197 = vperm.xlu0 %1196, %v1188
        %v1198 = vpop.permute.xlu0 %1197
        %1201 = vset.pattern.permute.xlu0 0
        %1202 = vperm.xlu0 %1201, %v1189
        %v1203 = vpop.permute.xlu0 %1202
        %v1205 = vadd.f32 %v1181, %v1193
        %v1206 = vadd.f32 %v1182, %v1193
        %v1207 = vadd.f32 %v1183, %v1198
        %v1208 = vadd.f32 %v1184, %v1198
        %v1209 = vadd.f32 %v1185, %v1203
        %v1210 = vadd.f32 %v1186, %v1203
        %v1211 = vmul.f32 %v1205, 0.5
        %v1212 = vmul.f32 %v1206, 0.5
        %v1213 = vmul.f32 %v1207, 0.5
        %v1214 = vmul.f32 %v1208, 0.5
        %v1215 = vmul.f32 %v1209, 0.5
        %v1216 = vmul.f32 %v1210, 0.5
        %v1217 = vmul.f32 %v1205, 0.70710677
        %v1218 = vmul.f32 %v1206, 0.70710677
        %v1219 = vmul.f32 %v1207, 0.70710677
        %v1220 = vmul.f32 %v1208, 0.70710677
        %v1221 = vmul.f32 %v1209, 0.70710677
        %v1222 = vmul.f32 %v1210, 0.70710677
        %v1223 = verf.f32.pop %v1217
        %v1224 = verf.f32.pop %v1218
        %v1225 = verf.f32.pop %v1219
        %v1226 = verf.f32.pop %v1220
        %v1227 = verf.f32.pop %v1221
        %v1228 = verf.f32.pop %v1222
        %v1229 = vadd.f32 %v1223, 1.0
        %v1230 = vadd.f32 %v1224, 1.0
        %v1231 = vadd.f32 %v1225, 1.0
        %v1232 = vadd.f32 %v1226, 1.0
        %v1233 = vadd.f32 %v1227, 1.0
        %v1234 = vadd.f32 %v1228, 1.0
        %v1235 = vmul.f32 %v1211, %v1229
        %v1236 = vmul.f32 %v1212, %v1230
        %v1237 = vmul.f32 %v1213, %v1231
        %v1238 = vmul.f32 %v1214, %v1232
        %v1239 = vmul.f32 %v1215, %v1233
        %v1240 = vmul.f32 %v1216, %v1234
        %1241 = vrot.lane.b32.xlu0 %v1235, 17
        %v1242 = vpop.permute.xlu0 %1241
        %1243 = vrot.lane.b32.xlu0 %v1237, 17
        %v1244 = vpop.permute.xlu0 %1243
        %1245 = vrot.lane.b32.xlu0 %v1239, 17
        %v1246 = vpop.permute.xlu0 %1245
        %1247 = vrot.lane.b32.xlu0 %v1236, 17
        %v1248 = vpop.permute.xlu0 %1247
        %1249 = vrot.lane.b32.xlu0 %v1238, 17
        %v1250 = vpop.permute.xlu0 %1249
        %1251 = vrot.lane.b32.xlu0 %v1240, 17
        %v1252 = vpop.permute.xlu0 %1251
        %v1253 = vsel %vm623, %v1242, %v1248
        %v1254 = vsel %vm623, %v1244, %v1250
        %v1255 = vsel %vm623, %v1246, %v1252
        %v1256 = vsel %vm623, %v1248, %v1242
        %v1257 = vsel %vm623, %v1250, %v1244
        %v1258 = vsel %vm623, %v1252, %v1246
        %v1259 = vmul.f32 %v1256, %v633
        %v1260 = vmul.f32 %v1253, %v637
        %v1261 = vmul.f32 %v1257, %v633
        %v1262 = vmul.f32 %v1254, %v637
        %v1263 = vmul.f32 %v1258, %v633
        %v1264 = vmul.f32 %v1255, %v637
        %1265 = vst [vmem:[#allocation2] sm:$0xff] %v1259
        %1266 = vst [vmem:[#allocation2 + $0x8] sm:$0xff] %v1260
        %1267 = vst [vmem:[#allocation2 + $0x10] sm:$0xff] %v1261
        %1268 = vst [vmem:[#allocation2 + $0x18] sm:$0xff] %v1262
        %1269 = vst [vmem:[#allocation2 + $0x20] sm:$0xff] %v1263
        %1270 = vst [vmem:[#allocation2 + $0x28] sm:$0xff] %v1264
        %1271 = vrot.lane.b32.xlu0 %v1235, 16
        %v1272 = vpop.permute.xlu0 %1271
        %1273 = vrot.lane.b32.xlu0 %v1237, 16
        %v1274 = vpop.permute.xlu0 %1273
        %1275 = vrot.lane.b32.xlu0 %v1239, 16
        %v1276 = vpop.permute.xlu0 %1275
        %1277 = vrot.lane.b32.xlu0 %v1236, 16
        %v1278 = vpop.permute.xlu0 %1277
        %1279 = vrot.lane.b32.xlu0 %v1238, 16
        %v1280 = vpop.permute.xlu0 %1279
        %1281 = vrot.lane.b32.xlu0 %v1240, 16
        %v1282 = vpop.permute.xlu0 %1281
        %v1283 = vsel %vm662, %v1272, %v1278
        %v1284 = vsel %vm662, %v1274, %v1280
        %v1285 = vsel %vm662, %v1276, %v1282
        %v1286 = vsel %vm662, %v1278, %v1272
        %v1287 = vsel %vm662, %v1280, %v1274
        %v1288 = vsel %vm662, %v1282, %v1276
        %v1289 = vmul.f32 %v1286, %v672
        %v1290 = vmul.f32 %v1283, %v676
        %v1291 = vmul.f32 %v1287, %v672
        %v1292 = vmul.f32 %v1284, %v676
        %v1293 = vmul.f32 %v1288, %v672
        %v1294 = vmul.f32 %v1285, %v676
        %1295 = vst [vmem:[#allocation2 + $0x30] sm:$0xff] %v1289
        %1296 = vst [vmem:[#allocation2 + $0x38] sm:$0xff] %v1290
        %1297 = vst [vmem:[#allocation2 + $0x40] sm:$0xff] %v1291
        %1298 = vst [vmem:[#allocation2 + $0x48] sm:$0xff] %v1292
        %1299 = vst [vmem:[#allocation2 + $0x50] sm:$0xff] %v1293
        %1300 = vst [vmem:[#allocation2 + $0x58] sm:$0xff] %v1294
        %1301 = vrot.lane.b32.xlu0 %v1235, 15
        %v1302 = vpop.permute.xlu0 %1301
        %1303 = vrot.lane.b32.xlu0 %v1237, 15
        %v1304 = vpop.permute.xlu0 %1303
        %1305 = vrot.lane.b32.xlu0 %v1239, 15
        %v1306 = vpop.permute.xlu0 %1305
        %1307 = vrot.lane.b32.xlu0 %v1236, 15
        %v1308 = vpop.permute.xlu0 %1307
        %1309 = vrot.lane.b32.xlu0 %v1238, 15
        %v1310 = vpop.permute.xlu0 %1309
        %1311 = vrot.lane.b32.xlu0 %v1240, 15
        %v1312 = vpop.permute.xlu0 %1311
        %v1313 = vsel %vm701, %v1302, %v1308
        %v1314 = vsel %vm701, %v1304, %v1310
        %v1315 = vsel %vm701, %v1306, %v1312
        %v1316 = vsel %vm701, %v1308, %v1302
        %v1317 = vsel %vm701, %v1310, %v1304
        %v1318 = vsel %vm701, %v1312, %v1306
        %v1319 = vmul.f32 %v1316, %v711
        %v1320 = vmul.f32 %v1313, %v715
        %v1321 = vmul.f32 %v1317, %v711
        %v1322 = vmul.f32 %v1314, %v715
        %v1323 = vmul.f32 %v1318, %v711
        %v1324 = vmul.f32 %v1315, %v715
        %1325 = vst [vmem:[#allocation2 + $0x60] sm:$0xff] %v1319
        %1326 = vst [vmem:[#allocation2 + $0x68] sm:$0xff] %v1320
        %1327 = vst [vmem:[#allocation2 + $0x70] sm:$0xff] %v1321
        %1328 = vst [vmem:[#allocation2 + $0x78] sm:$0xff] %v1322
        %1329 = vst [vmem:[#allocation2 + $0x80] sm:$0xff] %v1323
        %1330 = vst [vmem:[#allocation2 + $0x88] sm:$0xff] %v1324
        %1331 = vrot.lane.b32.xlu0 %v1235, 1
        %v1332 = vpop.permute.xlu0 %1331
        %1333 = vrot.lane.b32.xlu0 %v1237, 1
        %v1334 = vpop.permute.xlu0 %1333
        %1335 = vrot.lane.b32.xlu0 %v1239, 1
        %v1336 = vpop.permute.xlu0 %1335
        %1337 = vrot.lane.b32.xlu0 %v1236, 1
        %v1338 = vpop.permute.xlu0 %1337
        %1339 = vrot.lane.b32.xlu0 %v1238, 1
        %v1340 = vpop.permute.xlu0 %1339
        %1341 = vrot.lane.b32.xlu0 %v1240, 1
        %v1342 = vpop.permute.xlu0 %1341
        %v1343 = vsel %vm869, %v1332, %v1338
        %v1344 = vsel %vm869, %v1334, %v1340
        %v1345 = vsel %vm869, %v1336, %v1342
        %v1346 = vsel %vm869, %v1338, %v1332
        %v1347 = vsel %vm869, %v1340, %v1334
        %v1348 = vsel %vm869, %v1342, %v1336
        %v1349 = vmul.f32 %v1346, %v879
        %v1350 = vmul.f32 %v1343, %v883
        %v1351 = vmul.f32 %v1347, %v879
        %v1352 = vmul.f32 %v1344, %v883
        %v1353 = vmul.f32 %v1348, %v879
        %v1354 = vmul.f32 %v1345, %v883
        %1355 = vst [vmem:[#allocation2 + $0x90] sm:$0xff] %v1349
        %1356 = vst [vmem:[#allocation2 + $0x98] sm:$0xff] %v1350
        %1357 = vst [vmem:[#allocation2 + $0xa0] sm:$0xff] %v1351
        %1358 = vst [vmem:[#allocation2 + $0xa8] sm:$0xff] %v1352
        %1359 = vst [vmem:[#allocation2 + $0xb0] sm:$0xff] %v1353
        %1360 = vst [vmem:[#allocation2 + $0xb8] sm:$0xff] %v1354
        %1361 = vst [vmem:[#allocation2 + $0xc0] sm:$0xff] %v1235
        %1362 = vst [vmem:[#allocation2 + $0xc8] sm:$0xff] %v1236
        %1363 = vst [vmem:[#allocation2 + $0xd0] sm:$0xff] %v1237
        %1364 = vst [vmem:[#allocation2 + $0xd8] sm:$0xff] %v1238
        %1365 = vst [vmem:[#allocation2 + $0xe0] sm:$0xff] %v1239
        %1366 = vst [vmem:[#allocation2 + $0xe8] sm:$0xff] %v1240
        %1367 = vrot.lane.b32.xlu0 %v1235, 127
        %v1368 = vpop.permute.xlu0 %1367
        %1369 = vrot.lane.b32.xlu0 %v1237, 127
        %v1370 = vpop.permute.xlu0 %1369
        %1371 = vrot.lane.b32.xlu0 %v1239, 127
        %v1372 = vpop.permute.xlu0 %1371
        %1373 = vrot.lane.b32.xlu0 %v1236, 127
        %v1374 = vpop.permute.xlu0 %1373
        %1375 = vrot.lane.b32.xlu0 %v1238, 127
        %v1376 = vpop.permute.xlu0 %1375
        %1377 = vrot.lane.b32.xlu0 %v1240, 127
        %v1378 = vpop.permute.xlu0 %1377
        %v1379 = vsel %vm914, %v1368, %v1374
        %v1380 = vsel %vm914, %v1370, %v1376
        %v1381 = vsel %vm914, %v1372, %v1378
        %v1382 = vsel %vm914, %v1374, %v1368
        %v1383 = vsel %vm914, %v1376, %v1370
        %v1384 = vsel %vm914, %v1378, %v1372
        %v1385 = vmul.f32 %v1379, %v924
        %v1386 = vmul.f32 %v1382, %v928
        %v1387 = vmul.f32 %v1380, %v924
        %v1388 = vmul.f32 %v1383, %v928
        %v1389 = vmul.f32 %v1381, %v924
        %v1390 = vmul.f32 %v1384, %v928
        %1391 = vst [vmem:[#allocation2 + $0xf0] sm:$0xff] %v1385
        %1392 = vst [vmem:[#allocation2 + $0xf8] sm:$0xff] %v1386
        %1393 = vst [vmem:[#allocation2 + $0x100] sm:$0xff] %v1387
        %1394 = vst [vmem:[#allocation2 + $0x108] sm:$0xff] %v1388
        %1395 = vst [vmem:[#allocation2 + $0x110] sm:$0xff] %v1389
        %1396 = vst [vmem:[#allocation2 + $0x118] sm:$0xff] %v1390
        %1397 = vrot.lane.b32.xlu0 %v1235, 113
        %v1398 = vpop.permute.xlu0 %1397
        %1399 = vrot.lane.b32.xlu0 %v1237, 113
        %v1400 = vpop.permute.xlu0 %1399
        %1401 = vrot.lane.b32.xlu0 %v1239, 113
        %v1402 = vpop.permute.xlu0 %1401
        %1403 = vrot.lane.b32.xlu0 %v1236, 113
        %v1404 = vpop.permute.xlu0 %1403
        %1405 = vrot.lane.b32.xlu0 %v1238, 113
        %v1406 = vpop.permute.xlu0 %1405
        %1407 = vrot.lane.b32.xlu0 %v1240, 113
        %v1408 = vpop.permute.xlu0 %1407
        %v1409 = vsel %vm1082, %v1398, %v1404
        %v1410 = vsel %vm1082, %v1400, %v1406
        %v1411 = vsel %vm1082, %v1402, %v1408
        %v1412 = vsel %vm1082, %v1404, %v1398
        %v1413 = vsel %vm1082, %v1406, %v1400
        %v1414 = vsel %vm1082, %v1408, %v1402
        %v1415 = vmul.f32 %v1409, %v1092
        %v1416 = vmul.f32 %v1412, %v1096
        %v1417 = vmul.f32 %v1410, %v1092
        %v1418 = vmul.f32 %v1413, %v1096
        %v1419 = vmul.f32 %v1411, %v1092
        %v1420 = vmul.f32 %v1414, %v1096
        %1421 = vst [vmem:[#allocation2 + $0x120] sm:$0xff] %v1415
        %1422 = vst [vmem:[#allocation2 + $0x128] sm:$0xff] %v1416
        %1423 = vst [vmem:[#allocation2 + $0x130] sm:$0xff] %v1417
        %1424 = vst [vmem:[#allocation2 + $0x138] sm:$0xff] %v1418
        %1425 = vst [vmem:[#allocation2 + $0x140] sm:$0xff] %v1419
        %1426 = vst [vmem:[#allocation2 + $0x148] sm:$0xff] %v1420
        %1427 = vrot.lane.b32.xlu0 %v1235, 112
        %v1428 = vpop.permute.xlu0 %1427
        %1429 = vrot.lane.b32.xlu0 %v1237, 112
        %v1430 = vpop.permute.xlu0 %1429
        %1431 = vrot.lane.b32.xlu0 %v1239, 112
        %v1432 = vpop.permute.xlu0 %1431
        %1433 = vrot.lane.b32.xlu0 %v1236, 112
        %v1434 = vpop.permute.xlu0 %1433
        %1435 = vrot.lane.b32.xlu0 %v1238, 112
        %v1436 = vpop.permute.xlu0 %1435
        %1437 = vrot.lane.b32.xlu0 %v1240, 112
        %v1438 = vpop.permute.xlu0 %1437
        %v1439 = vsel %vm1121, %v1428, %v1434
        %v1440 = vsel %vm1121, %v1430, %v1436
        %v1441 = vsel %vm1121, %v1432, %v1438
        %v1442 = vsel %vm1121, %v1434, %v1428
        %v1443 = vsel %vm1121, %v1436, %v1430
        %v1444 = vsel %vm1121, %v1438, %v1432
        %v1445 = vmul.f32 %v1439, %v1131
        %v1446 = vmul.f32 %v1442, %v1135
        %v1447 = vmul.f32 %v1440, %v1131
        %v1448 = vmul.f32 %v1443, %v1135
        %v1449 = vmul.f32 %v1441, %v1131
        %v1450 = vmul.f32 %v1444, %v1135
        %1451 = vst [vmem:[#allocation2 + $0x150] sm:$0xff] %v1445
        %1452 = vst [vmem:[#allocation2 + $0x158] sm:$0xff] %v1446
        %1453 = vst [vmem:[#allocation2 + $0x160] sm:$0xff] %v1447
        %1454 = vst [vmem:[#allocation2 + $0x168] sm:$0xff] %v1448
        %1455 = vst [vmem:[#allocation2 + $0x170] sm:$0xff] %v1449
        %1456 = vst [vmem:[#allocation2 + $0x178] sm:$0xff] %v1450
        %1457 = vrot.lane.b32.xlu0 %v1235, 111
        %v1458 = vpop.permute.xlu0 %1457
        %1459 = vrot.lane.b32.xlu0 %v1237, 111
        %v1460 = vpop.permute.xlu0 %1459
        %1461 = vrot.lane.b32.xlu0 %v1239, 111
        %v1462 = vpop.permute.xlu0 %1461
        %1463 = vrot.lane.b32.xlu0 %v1236, 111
        %v1464 = vpop.permute.xlu0 %1463
        %1465 = vrot.lane.b32.xlu0 %v1238, 111
        %v1466 = vpop.permute.xlu0 %1465
        %1467 = vrot.lane.b32.xlu0 %v1240, 111
        %v1468 = vpop.permute.xlu0 %1467
        %v1469 = vsel %vm1160, %v1458, %v1464
        %v1470 = vsel %vm1160, %v1460, %v1466
        %v1471 = vsel %vm1160, %v1462, %v1468
        %v1472 = vsel %vm1160, %v1464, %v1458
        %v1473 = vsel %vm1160, %v1466, %v1460
        %v1474 = vsel %vm1160, %v1468, %v1462
        %v1475 = vmul.f32 %v1469, %v1170
        %v1476 = vmul.f32 %v1472, %v1174
        %v1477 = vmul.f32 %v1470, %v1170
        %v1478 = vmul.f32 %v1473, %v1174
        %v1479 = vmul.f32 %v1471, %v1170
        %v1480 = vmul.f32 %v1474, %v1174
        %1481 = vst [vmem:[#allocation2 + $0x180] sm:$0xff] %v1475
        %1482 = vst [vmem:[#allocation2 + $0x188] sm:$0xff] %v1476
        %1483 = vst [vmem:[#allocation2 + $0x190] sm:$0xff] %v1477
        %1484 = vst [vmem:[#allocation2 + $0x198] sm:$0xff] %v1478
        %1485 = vst [vmem:[#allocation2 + $0x1a0] sm:$0xff] %v1479
        %1486 = vst [vmem:[#allocation2 + $0x1a8] sm:$0xff] %v1480
        %v1487 = vld [vmem:[%s4] sm:$0xff]
        %v1488 = vld [vmem:[%s4 + $0x8] sm:$0xff]
        %v1489 = vld [vmem:[%s4 + $0x10] sm:$0xff]
        %v1490 = vld [vmem:[%s4 + $0x18] sm:$0xff]
        %v1491 = vld [vmem:[%s4 + $0x20] sm:$0xff]
        %v1492 = vld [vmem:[%s4 + $0x28] sm:$0xff]
        %v1493 = vld [vmem:[%s4 + $0x30] sm:$0xff]
        %v1494 = vld [vmem:[%s4 + $0x38] sm:$0x33]
        %v1495 = vld [vmem:[#allocation2] sm:$0xff]
        %v1496 = vld [vmem:[#allocation2 + $0x8] sm:$0xff]
        %v1497 = vld [vmem:[#allocation2 + $0x10] sm:$0xff]
        %v1498 = vld [vmem:[#allocation2 + $0x18] sm:$0xff]
        %v1499 = vld [vmem:[#allocation2 + $0x20] sm:$0xff]
        %v1500 = vld [vmem:[#allocation2 + $0x28] sm:$0xff]
        %v1501 = vld [vmem:[#allocation2 + $0x30] sm:$0xff]
        %v1502 = vld [vmem:[#allocation2 + $0x38] sm:$0xff]
        %v1503 = vld [vmem:[#allocation2 + $0x40] sm:$0xff]
        %v1504 = vld [vmem:[#allocation2 + $0x48] sm:$0xff]
        %v1505 = vld [vmem:[#allocation2 + $0x50] sm:$0xff]
        %v1506 = vld [vmem:[#allocation2 + $0x58] sm:$0xff]
        %v1507 = vld [vmem:[#allocation2 + $0x60] sm:$0xff]
        %v1508 = vld [vmem:[#allocation2 + $0x68] sm:$0xff]
        %v1509 = vld [vmem:[#allocation2 + $0x70] sm:$0xff]
        %v1510 = vld [vmem:[#allocation2 + $0x78] sm:$0xff]
        %v1511 = vld [vmem:[#allocation2 + $0x80] sm:$0xff]
        %v1512 = vld [vmem:[#allocation2 + $0x88] sm:$0xff]
        %v1513 = vld [vmem:[#allocation2 + $0x90] sm:$0xff]
        %v1514 = vld [vmem:[#allocation2 + $0x98] sm:$0xff]
        %v1515 = vld [vmem:[#allocation2 + $0xa0] sm:$0xff]
        %v1516 = vld [vmem:[#allocation2 + $0xa8] sm:$0xff]
        %v1517 = vld [vmem:[#allocation2 + $0xb0] sm:$0xff]
        %v1518 = vld [vmem:[#allocation2 + $0xb8] sm:$0xff]
        %v1519 = vld [vmem:[#allocation2 + $0xc0] sm:$0xff]
        %v1520 = vld [vmem:[#allocation2 + $0xc8] sm:$0xff]
        %v1521 = vld [vmem:[#allocation2 + $0xd0] sm:$0xff]
        %v1522 = vld [vmem:[#allocation2 + $0xd8] sm:$0xff]
        %v1523 = vld [vmem:[#allocation2 + $0xe0] sm:$0xff]
        %v1524 = vld [vmem:[#allocation2 + $0xe8] sm:$0xff]
        %v1525 = vld [vmem:[#allocation2 + $0xf0] sm:$0xff]
        %v1526 = vld [vmem:[#allocation2 + $0xf8] sm:$0xff]
        %v1527 = vld [vmem:[#allocation2 + $0x100] sm:$0xff]
        %v1528 = vld [vmem:[#allocation2 + $0x108] sm:$0xff]
        %v1529 = vld [vmem:[#allocation2 + $0x110] sm:$0xff]
        %v1530 = vld [vmem:[#allocation2 + $0x118] sm:$0xff]
        %v1531 = vld [vmem:[#allocation2 + $0x120] sm:$0xff]
        %v1532 = vld [vmem:[#allocation2 + $0x128] sm:$0xff]
        %v1533 = vld [vmem:[#allocation2 + $0x130] sm:$0xff]
        %v1534 = vld [vmem:[#allocation2 + $0x138] sm:$0xff]
        %v1535 = vld [vmem:[#allocation2 + $0x140] sm:$0xff]
        %v1536 = vld [vmem:[#allocation2 + $0x148] sm:$0xff]
        %v1537 = vld [vmem:[#allocation2 + $0x150] sm:$0xff]
        %v1538 = vld [vmem:[#allocation2 + $0x158] sm:$0xff]
        %v1539 = vld [vmem:[#allocation2 + $0x160] sm:$0xff]
        %v1540 = vld [vmem:[#allocation2 + $0x168] sm:$0xff]
        %v1541 = vld [vmem:[#allocation2 + $0x170] sm:$0xff]
        %v1542 = vld [vmem:[#allocation2 + $0x178] sm:$0xff]
        %v1543 = vld [vmem:[#allocation2 + $0x180] sm:$0xff]
        %v1544 = vld [vmem:[#allocation2 + $0x188] sm:$0xff]
        %v1545 = vld [vmem:[#allocation2 + $0x190] sm:$0xff]
        %v1546 = vld [vmem:[#allocation2 + $0x198] sm:$0xff]
        %v1547 = vld [vmem:[#allocation2 + $0x1a0] sm:$0xff]
        %v1548 = vld [vmem:[#allocation2 + $0x1a8] sm:$0xff]
        %v1549 = vpack.c.bf16 %v1497, %v1495
        %v1550 = vpack.c.bf16 %v1498, %v1496
        %v1551 = vpack.c.bf16 %v1501, %v1499
        %v1552 = vpack.c.bf16 %v1502, %v1500
        %v1553 = vpack.c.bf16 %v1505, %v1503
        %v1554 = vpack.c.bf16 %v1506, %v1504
        %v1555 = vpack.c.bf16 %v1509, %v1507
        %v1556 = vpack.c.bf16 %v1510, %v1508
        %v1557 = vpack.c.bf16 %v1513, %v1511
        %v1558 = vpack.c.bf16 %v1514, %v1512
        %v1559 = vpack.c.bf16 %v1517, %v1515
        %v1560 = vpack.c.bf16 %v1518, %v1516
        %v1561 = vpack.c.bf16 %v1521, %v1519
        %v1562 = vpack.c.bf16 %v1522, %v1520
        %v1563 = vpack.c.bf16 %v1525, %v1523
        %v1564 = vpack.c.bf16 %v1526, %v1524
        %v1565 = vpack.c.bf16 %v1529, %v1527
        %v1566 = vpack.c.bf16 %v1530, %v1528
        %v1567 = vpack.c.bf16 %v1533, %v1531
        %v1568 = vpack.c.bf16 %v1534, %v1532
        %v1569 = vpack.c.bf16 %v1537, %v1535
        %v1570 = vpack.c.bf16 %v1538, %v1536
        %v1571 = vpack.c.bf16 %v1541, %v1539
        %v1572 = vpack.c.bf16 %v1542, %v1540
        %v1573 = vpack.c.bf16 %v1545, %v1543
        %v1574 = vpack.c.bf16 %v1546, %v1544
        %v1575 = vpack.c.bf16 %v1547, %v1547
        %v1576 = vpack.c.bf16 %v1548, %v1548
        %v1577 = vld [vmem:[%s5] sm:$0xff]
        %v1578 = vld [vmem:[%s5 + $0x8] sm:$0xff]
        %v1579 = vld [vmem:[%s5 + $0x10] sm:$0xff]
        %v1580 = vld [vmem:[%s5 + $0x18] sm:$0xff]
        %v1581 = vld [vmem:[%s5 + $0x20] sm:$0xff]
        %v1582 = vld [vmem:[%s5 + $0x28] sm:$0xff]
        %v1583 = vld [vmem:[%s5 + $0x30] sm:$0xff]
        %v1584 = vld [vmem:[%s5 + $0x38] sm:$0xf]
        %1586 = vset.pattern.permute.xlu0 0
        %1587 = vperm.xlu0 %1586, %v1577
        %v1588 = vpop.permute.xlu0 %1587
        %1591 = vset.pattern.permute.xlu0 0
        %1592 = vperm.xlu0 %1591, %v1578
        %v1593 = vpop.permute.xlu0 %1592
        %1596 = vset.pattern.permute.xlu0 0
        %1597 = vperm.xlu0 %1596, %v1579
        %v1598 = vpop.permute.xlu0 %1597
        %1601 = vset.pattern.permute.xlu0 0
        %1602 = vperm.xlu0 %1601, %v1580
        %v1603 = vpop.permute.xlu0 %1602
        %1606 = vset.pattern.permute.xlu0 0
        %1607 = vperm.xlu0 %1606, %v1581
        %v1608 = vpop.permute.xlu0 %1607
        %1611 = vset.pattern.permute.xlu0 0
        %1612 = vperm.xlu0 %1611, %v1582
        %v1613 = vpop.permute.xlu0 %1612
        %1616 = vset.pattern.permute.xlu0 0
        %1617 = vperm.xlu0 %1616, %v1583
        %v1618 = vpop.permute.xlu0 %1617
        %1621 = vset.pattern.permute.xlu0 0
        %1622 = vperm.xlu0 %1621, %v1584
        %v1623 = vpop.permute.xlu0 %1622
        %v1633 = vunpack.c.l.b16 %v1487
        %v1634 = vunpack.c.h.b16 %v1487
        %v1635 = vunpack.c.l.b16 %v1488
        %v1636 = vunpack.c.h.b16 %v1488
        %v1637 = vunpack.c.l.b16 %v1489
        %v1638 = vunpack.c.h.b16 %v1489
        %v1639 = vunpack.c.l.b16 %v1490
        %v1640 = vunpack.c.h.b16 %v1490
        %v1641 = vunpack.c.l.b16 %v1491
        %v1642 = vunpack.c.h.b16 %v1491
        %v1643 = vunpack.c.l.b16 %v1492
        %v1644 = vunpack.c.h.b16 %v1492
        %v1645 = vunpack.c.l.b16 %v1493
        %v1646 = vunpack.c.h.b16 %v1493
        %v1647 = vunpack.c.l.b16 %v1494
        %v1648 = vunpack.c.h.b16 %v1494
        %v1649 = vpack.c.b16 %v1635, %v1633
        %v1650 = vpack.c.b16 %v1636, %v1634
        %v1651 = vpack.c.b16 %v1639, %v1637
        %v1652 = vpack.c.b16 %v1640, %v1638
        %v1653 = vpack.c.b16 %v1643, %v1641
        %v1654 = vpack.c.b16 %v1644, %v1642
        %v1655 = vpack.c.b16 %v1647, %v1645
        %v1656 = vpack.c.b16 %v1648, %v1646
        %vm1661 = vcmask 719872
        %v1663 = vsel %vm1661, %v1650, 0
        %v1666 = vsel %vm1661, %v1652, 0
        %v1669 = vsel %vm1661, %v1654, 0
        %v1672 = vsel %vm1661, %v1656, 0
        %vm1674 = vcmask 1043456
        %v1676 = vsel %vm1674, %v1575, 0
        %v1679 = vsel %vm1674, %v1576, 0
        %1681 = vmatprep.subr.bf16.mxu0 %v1564
        %1682 = vmatpush1.bf16.msra.mxu0 %v1563
        %1683 = vmatprep.subr.bf16.mxu0 %v1562
        %1684 = vmatpush1.bf16.msra.mxu0 %v1561
        %1685 = vmatprep.subr.bf16.mxu0 %v1560
        %1686 = vmatpush1.bf16.msra.mxu0 %v1559
        %1687 = vmatprep.subr.bf16.mxu0 %v1558
        %1688 = vmatpush1.bf16.msra.mxu0 %v1557
        %1689 = vmatprep.subr.bf16.mxu0 %v1556
        %1690 = vmatpush1.bf16.msra.mxu0 %v1555
        %1691 = vmatprep.subr.bf16.mxu0 %v1554
        %1692 = vmatpush1.bf16.msra.mxu0 %v1553
        %1693 = vmatprep.subr.bf16.mxu0 %v1552
        %1694 = vmatpush1.bf16.msra.mxu0 %v1551
        %1695 = vmatprep.subr.bf16.mxu0 %v1550
        %1696 = vmatpush1.bf16.msra.mxu0 %v1549
        %1697 = vmatprep.subr.bf16.mxu0 0
        %1698 = vmatpush2.bf16.msra.mxu0 0
        %1699 = vmatprep.subr.bf16.mxu0 0
        %1700 = vmatpush2.bf16.msra.mxu0 0
        %1701 = vmatprep.subr.bf16.mxu0 %v1679
        %1702 = vmatpush2.bf16.msra.mxu0 %v1676
        %1703 = vmatprep.subr.bf16.mxu0 %v1574
        %1704 = vmatpush2.bf16.msra.mxu0 %v1573
        %1705 = vmatprep.subr.bf16.mxu0 %v1572
        %1706 = vmatpush2.bf16.msra.mxu0 %v1571
        %1707 = vmatprep.subr.bf16.mxu0 %v1570
        %1708 = vmatpush2.bf16.msra.mxu0 %v1569
        %1709 = vmatprep.subr.bf16.mxu0 %v1568
        %1710 = vmatpush2.bf16.msra.mxu0 %v1567
        %1711 = vmatprep.subr.bf16.mxu0 %v1566
        %1712 = vmatpush2.bf16.msra.mxu0 %v1565
        %1713 = vmatprep.mubr.bf16.mxu0 %v1663
        %1714 = vmatmul.mubr.bf16.gmra.mxu0 %v1649
        %v1715 = vpop.f32.mrf.mxu0
        %v1716 = vadd.f32 %v1588, %v1715
        %v1717 = vpop.f32.mrf.mxu0
        %v1718 = vadd.f32 %v1588, %v1717
        %v1719 = vpop.f32.mrf.mxu0
        %v1720 = vadd.f32 %v1593, %v1719
        %v1721 = vpop.f32.mrf.mxu0
        %v1722 = vadd.f32 %v1593, %v1721
        %1723 = vmatprep.mubr.bf16.mxu0 %v1666
        %1724 = vmatmul.mubr.bf16.gmra.mxu0 %v1651
        %v1725 = vpop.f32.mrf.mxu0
        %v1726 = vadd.f32 %v1598, %v1725
        %v1727 = vpop.f32.mrf.mxu0
        %v1728 = vadd.f32 %v1598, %v1727
        %v1729 = vpop.f32.mrf.mxu0
        %v1730 = vadd.f32 %v1603, %v1729
        %v1731 = vpop.f32.mrf.mxu0
        %v1732 = vadd.f32 %v1603, %v1731
        %1733 = vmatprep.mubr.bf16.mxu0 %v1669
        %1734 = vmatmul.mubr.bf16.gmra.mxu0 %v1653
        %v1735 = vpop.f32.mrf.mxu0
        %v1736 = vadd.f32 %v1608, %v1735
        %v1737 = vpop.f32.mrf.mxu0
        %v1738 = vadd.f32 %v1608, %v1737
        %v1739 = vpop.f32.mrf.mxu0
        %v1740 = vadd.f32 %v1613, %v1739
        %v1741 = vpop.f32.mrf.mxu0
        %v1742 = vadd.f32 %v1613, %v1741
        %1743 = vmatprep.mubr.bf16.mxu0 %v1672
        %1744 = vmatmul.mubr.bf16.gmra.mxu0 %v1655
        %v1745 = vpop.f32.mrf.mxu0
        %v1746 = vadd.f32 %v1618, %v1745
        %v1747 = vpop.f32.mrf.mxu0
        %v1748 = vadd.f32 %v1618, %v1747
        %v1749 = vpop.f32.mrf.mxu0
        %v1750 = vadd.f32 %v1623, %v1749
        %v1751 = vpop.f32.mrf.mxu0
        %v1752 = vadd.f32 %v1623, %v1751
        %1753 = vdwg.mxu0
        %v1754 = vadd.f32 %v1716, %v1718
        %1755 = vadd.xlane.f32.xlu0 %v1754
        %v1756 = vpop.xlane.xlu0 %1755
        %v1757 = vadd.f32 %v1720, %v1722
        %1758 = vadd.xlane.f32.xlu0 %v1757
        %v1759 = vpop.xlane.xlu0 %1758
        %v1760 = vadd.f32 %v1726, %v1728
        %1761 = vadd.xlane.f32.xlu0 %v1760
        %v1762 = vpop.xlane.xlu0 %1761
        %v1763 = vadd.f32 %v1730, %v1732
        %1764 = vadd.xlane.f32.xlu0 %v1763
        %v1765 = vpop.xlane.xlu0 %1764
        %v1766 = vadd.f32 %v1736, %v1738
        %1767 = vadd.xlane.f32.xlu0 %v1766
        %v1768 = vpop.xlane.xlu0 %1767
        %v1769 = vadd.f32 %v1740, %v1742
        %1770 = vadd.xlane.f32.xlu0 %v1769
        %v1771 = vpop.xlane.xlu0 %1770
        %v1772 = vadd.f32 %v1746, %v1748
        %1773 = vadd.xlane.f32.xlu0 %v1772
        %v1774 = vpop.xlane.xlu0 %1773
        %v1775 = vsel %vm1674, %v1750, 0.0
        %v1776 = vsel %vm1674, %v1752, 0.0
        %v1777 = vadd.f32 %v1775, %v1776
        %1778 = vadd.xlane.f32.xlu0 %v1777
        %v1779 = vpop.xlane.xlu0 %1778
        %v1780 = vrcp.pop 256.0
        %v1781 = vmul.f32 %v1756, %v1780
        %v1782 = vmul.f32 %v1759, %v1780
        %v1783 = vmul.f32 %v1762, %v1780
        %v1784 = vmul.f32 %v1765, %v1780
        %v1785 = vmul.f32 %v1768, %v1780
        %v1786 = vmul.f32 %v1771, %v1780
        %v1787 = vmul.f32 %v1774, %v1780
        %v1788 = vmul.f32 %v1779, %v1780
        %v1789 = vld [vmem:[%s6] sm:$0xff]
        %v1790 = vld [vmem:[%s6 + $0x8] sm:$0xff]
        %v1791 = vld [vmem:[%s6 + $0x10] sm:$0xff]
        %v1792 = vld [vmem:[%s6 + $0x18] sm:$0xff]
        %v1793 = vld [vmem:[%s6 + $0x20] sm:$0xff]
        %v1794 = vld [vmem:[%s6 + $0x28] sm:$0xff]
        %v1795 = vld [vmem:[%s6 + $0x30] sm:$0xff]
        %v1796 = vld [vmem:[%s6 + $0x38] sm:$0xf]
        %v1797 = vmul.f32 %v1781, %v1789
        %v1798 = vmul.f32 %v1782, %v1790
        %v1799 = vmul.f32 %v1783, %v1791
        %v1800 = vmul.f32 %v1784, %v1792
        %v1801 = vmul.f32 %v1785, %v1793
        %v1802 = vmul.f32 %v1786, %v1794
        %v1803 = vmul.f32 %v1787, %v1795
        %v1804 = vmul.f32 %v1788, %v1796
        %vm1805 = vcmask 15360
        %v1806 = vsel %vm1805, %v1797, 0.0
        %v1807 = vsel %vm1805, %v1798, 0.0
        %v1808 = vadd.f32 %v1806, %v1807
        %v1809 = vsel %vm1805, %v1799, 0.0
        %v1810 = vadd.f32 %v1808, %v1809
        %v1811 = vsel %vm1805, %v1800, 0.0
        %v1812 = vadd.f32 %v1810, %v1811
        %v1813 = vsel %vm1805, %v1801, 0.0
        %v1814 = vadd.f32 %v1812, %v1813
        %v1815 = vsel %vm1805, %v1802, 0.0
        %v1816 = vadd.f32 %v1814, %v1815
        %v1817 = vsel %vm1805, %v1803, 0.0
        %v1818 = vadd.f32 %v1816, %v1817
        %vm1819 = vcmask 11264
        %v1820 = vsel %vm1819, %v1804, 0.0
        %v1821 = vadd.f32 %v1818, %v1820
        %v1822 = vrot.slane %v1821, 4
        %v1823 = vadd.f32 %v1821, %v1822
        %v1824 = vrot.slane %v1823, 2
        %v1825 = vadd.f32 %v1823, %v1824
        %v1826 = vrot.slane %v1825, 1
        %v1827 = vadd.f32 %v1825, %v1826
        %v1828 = vld [vmem:[%s7] sm:$0x1]
        %v1829 = vadd.f32 %v1827, %v1828
        %v1830 = vmax.f32 %v1829, 0.0
        %v1831 = vld [vmem:[%s8] sm:$0xff]
        %v1832 = vld [vmem:[%s8 + $0x8] sm:$0xff]
        %v1833 = vld [vmem:[%s8 + $0x10] sm:$0xff]
        %v1834 = vld [vmem:[%s8 + $0x18] sm:$0xff]
        %v1835 = vld [vmem:[%s8 + $0x20] sm:$0xff]
        %v1836 = vld [vmem:[%s8 + $0x28] sm:$0xff]
        %v1837 = vld [vmem:[%s8 + $0x30] sm:$0xff]
        %v1838 = vld [vmem:[%s8 + $0x38] sm:$0xf]
        %v1839 = vlaneseq
        %v1840 = vshrl.u32 %v1839, 7
        %v1841 = vsub.s32 0, %v1840
        %v1842 = vrot.slane %v1830, %v1841
        %v1843 = vmul.f32 %v1831, %v1842
        %v1844 = vmul.f32 %v1832, %v1842
        %v1845 = vmul.f32 %v1833, %v1842
        %v1846 = vmul.f32 %v1834, %v1842
        %v1847 = vmul.f32 %v1835, %v1842
        %v1848 = vmul.f32 %v1836, %v1842
        %v1849 = vmul.f32 %v1837, %v1842
        %v1850 = vmul.f32 %v1838, %v1842
        %v1851 = vsel %vm1805, %v1843, 0.0
        %1852 = vadd.xlane.f32.xlu0 %v1851
        %v1853 = vpop.xlane.xlu0 %1852
        %v1854 = vsel %vm1805, %v1844, 0.0
        %1855 = vadd.xlane.f32.xlu0 %v1854
        %v1856 = vpop.xlane.xlu0 %1855
        %v1857 = vsel %vm1805, %v1845, 0.0
        %1858 = vadd.xlane.f32.xlu0 %v1857
        %v1859 = vpop.xlane.xlu0 %1858
        %v1860 = vsel %vm1805, %v1846, 0.0
        %1861 = vadd.xlane.f32.xlu0 %v1860
        %v1862 = vpop.xlane.xlu0 %1861
        %v1863 = vsel %vm1805, %v1847, 0.0
        %1864 = vadd.xlane.f32.xlu0 %v1863
        %v1865 = vpop.xlane.xlu0 %1864
        %v1866 = vsel %vm1805, %v1848, 0.0
        %1867 = vadd.xlane.f32.xlu0 %v1866
        %v1868 = vpop.xlane.xlu0 %1867
        %v1869 = vsel %vm1805, %v1849, 0.0
        %1870 = vadd.xlane.f32.xlu0 %v1869
        %v1871 = vpop.xlane.xlu0 %1870
        %v1872 = vsel %vm1819, %v1850, 0.0
        %1873 = vadd.xlane.f32.xlu0 %v1872
        %v1874 = vpop.xlane.xlu0 %1873
        %v1875 = vld [vmem:[%s9] sm:$0xff]
        %v1876 = vld [vmem:[%s9 + $0x8] sm:$0xff]
        %v1877 = vld [vmem:[%s9 + $0x10] sm:$0xff]
        %v1878 = vld [vmem:[%s9 + $0x18] sm:$0xff]
        %v1879 = vld [vmem:[%s9 + $0x20] sm:$0xff]
        %v1880 = vld [vmem:[%s9 + $0x28] sm:$0xff]
        %v1881 = vld [vmem:[%s9 + $0x30] sm:$0xff]
        %v1882 = vld [vmem:[%s9 + $0x38] sm:$0xf]
        %v1883 = vadd.f32 %v1853, %v1875
        %v1884 = vadd.f32 %v1856, %v1876
        %v1885 = vadd.f32 %v1859, %v1877
        %v1886 = vadd.f32 %v1862, %v1878
        %v1887 = vadd.f32 %v1865, %v1879
        %v1888 = vadd.f32 %v1868, %v1880
        %v1889 = vadd.f32 %v1871, %v1881
        %v1890 = vadd.f32 %v1874, %v1882
        %v1891 = vxor.u32 %v1883, 2147483648
        %v1892 = vxor.u32 %v1884, 2147483648
        %v1893 = vxor.u32 %v1885, 2147483648
        %v1894 = vxor.u32 %v1886, 2147483648
        %v1895 = vxor.u32 %v1887, 2147483648
        %v1896 = vxor.u32 %v1888, 2147483648
        %v1897 = vxor.u32 %v1889, 2147483648
        %v1898 = vxor.u32 %v1890, 2147483648
        %v1899 = vmul.f32 %v1891, 1.442695
        %v1900 = vpow.pop %v1899
        %v1901 = vmul.f32 %v1892, 1.442695
        %v1902 = vpow.pop %v1901
        %v1903 = vmul.f32 %v1893, 1.442695
        %v1904 = vpow.pop %v1903
        %v1905 = vmul.f32 %v1894, 1.442695
        %v1906 = vpow.pop %v1905
        %v1907 = vmul.f32 %v1895, 1.442695
        %v1908 = vpow.pop %v1907
        %v1909 = vmul.f32 %v1896, 1.442695
        %v1910 = vpow.pop %v1909
        %v1911 = vmul.f32 %v1897, 1.442695
        %v1912 = vpow.pop %v1911
        %v1913 = vmul.f32 %v1898, 1.442695
        %v1914 = vpow.pop %v1913
        %v1915 = vadd.f32 %v1900, 1.0
        %v1916 = vadd.f32 %v1902, 1.0
        %v1917 = vadd.f32 %v1904, 1.0
        %v1918 = vadd.f32 %v1906, 1.0
        %v1919 = vadd.f32 %v1908, 1.0
        %v1920 = vadd.f32 %v1910, 1.0
        %v1921 = vadd.f32 %v1912, 1.0
        %v1922 = vadd.f32 %v1914, 1.0
        %v1923 = vrcp.pop %v1915
        %v1924 = vmul.f32 1.0, %v1923
        %v1925 = vrcp.pop %v1916
        %v1926 = vmul.f32 1.0, %v1925
        %v1927 = vrcp.pop %v1917
        %v1928 = vmul.f32 1.0, %v1927
        %v1929 = vrcp.pop %v1918
        %v1930 = vmul.f32 1.0, %v1929
        %v1931 = vrcp.pop %v1919
        %v1932 = vmul.f32 1.0, %v1931
        %v1933 = vrcp.pop %v1920
        %v1934 = vmul.f32 1.0, %v1933
        %v1935 = vrcp.pop %v1921
        %v1936 = vmul.f32 1.0, %v1935
        %v1937 = vrcp.pop %v1922
        %v1938 = vmul.f32 1.0, %v1937
        %1940 = vset.pattern.permute.xlu0 0
        %1941 = vperm.xlu0 %1940, %v1924
        %v1942 = vpop.permute.xlu0 %1941
        %1945 = vset.pattern.permute.xlu0 0
        %1946 = vperm.xlu0 %1945, %v1926
        %v1947 = vpop.permute.xlu0 %1946
        %1950 = vset.pattern.permute.xlu0 0
        %1951 = vperm.xlu0 %1950, %v1928
        %v1952 = vpop.permute.xlu0 %1951
        %1955 = vset.pattern.permute.xlu0 0
        %1956 = vperm.xlu0 %1955, %v1930
        %v1957 = vpop.permute.xlu0 %1956
        %1960 = vset.pattern.permute.xlu0 0
        %1961 = vperm.xlu0 %1960, %v1932
        %v1962 = vpop.permute.xlu0 %1961
        %1965 = vset.pattern.permute.xlu0 0
        %1966 = vperm.xlu0 %1965, %v1934
        %v1967 = vpop.permute.xlu0 %1966
        %1970 = vset.pattern.permute.xlu0 0
        %1971 = vperm.xlu0 %1970, %v1936
        %v1972 = vpop.permute.xlu0 %1971
        %1975 = vset.pattern.permute.xlu0 0
        %1976 = vperm.xlu0 %1975, %v1938
        %v1977 = vpop.permute.xlu0 %1976
        %v1979 = vmul.f32 %v1716, %v1942
        %v1980 = vmul.f32 %v1718, %v1942
        %v1981 = vmul.f32 %v1720, %v1947
        %v1982 = vmul.f32 %v1722, %v1947
        %v1983 = vmul.f32 %v1726, %v1952
        %v1984 = vmul.f32 %v1728, %v1952
        %v1985 = vmul.f32 %v1730, %v1957
        %v1986 = vmul.f32 %v1732, %v1957
        %v1987 = vmul.f32 %v1736, %v1962
        %v1988 = vmul.f32 %v1738, %v1962
        %v1989 = vmul.f32 %v1740, %v1967
        %v1990 = vmul.f32 %v1742, %v1967
        %v1991 = vmul.f32 %v1746, %v1972
        %v1992 = vmul.f32 %v1748, %v1972
        %v1993 = vmul.f32 %v1750, %v1977
        %v1994 = vmul.f32 %v1752, %v1977
        %1995 = vst [vmem:[%s421] sm:$0xff] %v1979
        %1996 = vst [vmem:[%s421 + $0x8] sm:$0xff] %v1980
        %1997 = vst [vmem:[%s421 + $0x10] sm:$0xff] %v1981
        %1998 = vst [vmem:[%s421 + $0x18] sm:$0xff] %v1982
        %1999 = vst [vmem:[%s421 + $0x20] sm:$0xff] %v1983
        %2000 = vst [vmem:[%s421 + $0x28] sm:$0xff] %v1984
        %2001 = vst [vmem:[%s421 + $0x30] sm:$0xff] %v1985
        %2002 = vst [vmem:[%s421 + $0x38] sm:$0xff] %v1986
        %2003 = vst [vmem:[%s421 + $0x40] sm:$0xff] %v1987
        %2004 = vst [vmem:[%s421 + $0x48] sm:$0xff] %v1988
        %2005 = vst [vmem:[%s421 + $0x50] sm:$0xff] %v1989
        %2006 = vst [vmem:[%s421 + $0x58] sm:$0xff] %v1990
        %2007 = vst [vmem:[%s421 + $0x60] sm:$0xff] %v1991
        %2008 = vst [vmem:[%s421 + $0x68] sm:$0xff] %v1992
        %2009 = vst [vmem:[%s421 + $0x70] sm:$0xf] %v1993
        %2010 = vst [vmem:[%s421 + $0x78] sm:$0xf] %v1994
        %s2011 = sand.u32 %s247, 1
        %s2012 = scalar_lea.sflag [#allocation5], %s2011
        %s2013 = sand.u32 %s247, 1
        %s2014 = smul.addr %s2013, 128
        %s2015 = scalar_lea.vmem [#allocation4], %s2014
        // Predicated region
        $region99: #{tpu_custom_call.1} parent=93 // pred_check
          %p2016 = pneg %p257
        $region100: #{tpu_custom_call.1} parent=93 // pred_check_branch
          %2018 = sbr.rel (%p2016) target = $region102
        $region101: #{tpu_custom_call.1} parent=93 // pred_region
          %s2019 = smul.u32 2, %s24
          %s2021 = ssub.s32 2048, 2048
          %2022 = vsyncadd %s2012, %s2021
          %s2023 = smul.addr %s2019, 128
          %s2024 = scalar_lea.hbm %s10, %s2023
          %s2025 = sshll.u32 %s2015, 4
          %s2026 = int_to_ptr.vmem [resolvable:$true] %s2025
          %2031 = dma.vmem_to_hbm [thread:$0]  %s2026, 2048, %s2024, %s2012, 256, 512, 16
        $region102: #{tpu_custom_call.1} parent=93 // pred_fallthru
          _
      $region94: #{tpu_custom_call.1} parent=5 // pred_fallthru
        _
      %p2032 = scmp.le.s32.totalorder 2, %s19
      // Predicated region
      $region103: #{tpu_custom_call.1} parent=5 // pred_check
        %p2033 = pneg %p2032
      $region104: #{tpu_custom_call.1} parent=5 // pred_check_branch
        %2035 = sbr.rel (%p2033) target = $region106
      $region105: #{tpu_custom_call.1} parent=5 // pred_region
        %s2036 = ssub.s32 %s19, 2
        // Predicated region
        $region107: #{tpu_custom_call.1} parent=105 // pred_check
          %p2037 = pneg %p263
        $region108: #{tpu_custom_call.1} parent=105 // pred_check_branch
          %2039 = sbr.rel (%p2037) target = $region110
        $region109: #{tpu_custom_call.1} parent=105 // pred_region
          %s2040 = sand.u32 %s248, 1
          %s2041 = scalar_lea.sflag [#allocation5], %s2040
          %s2042 = sand.u32 %s248, 1
          %s2043 = smul.addr %s2042, 128
          %s2044 = scalar_lea.vmem [#allocation4], %s2043
          %2045 = dma.done %s2041, 2048
        $region110: #{tpu_custom_call.1} parent=105 // pred_fallthru
          _
      $region106: #{tpu_custom_call.1} parent=5 // pred_fallthru
        _
    $region6: #{tpu_custom_call.1} parent=1 // loop_footer
      %s23 = sadd.s32 1, %s19
    $region7: #{tpu_custom_call.1} parent=1 // loop_footer_branch
      %18 = sbr.rel target = $region3
    $region8: #{tpu_custom_call.1} parent=1 // loop_exit
      _
    %2046 = vsyncpa [#allocation5], 1
    %s2047 = scalar_lea.sflag [#allocation5], 1
    %2048 = vsyncpa %s2047, 1

</llo_original>
